<compile_context>
chip_gen: v7x
topology: tpu7x:2x2x1
jax: 0.10.0
libtpu: 0.0.40
codegen_flags: <defaults>
</compile_context>

<pallas_src>
import functools

import jax
import jax.numpy as jnp
from jax.experimental import pallas as pl
from jax.experimental.pallas import tpu as pltpu


def _fused_mha_kernel(x_ref, wqkv_ref, wp_ref, b_ref, o_ref, *, num_heads, head_size):
    # x_ref   : (BB, T, C)   -- BB batch rows
    # wqkv_ref: (C, 3C) bf16 -- fused [Wq | Wk | Wv], head h lives in cols [h*hs,(h+1)*hs)
    #                           of each C-wide group
    # wp_ref  : (C, C)  bf16 -- output projection weight (already transposed: y = cat @ wp)
    # b_ref   : (1, C)  f32  -- output projection bias
    # o_ref   : (BB, T, C)   -- final output
    bb, t, c = x_ref.shape
    # NOTE: the reference module scales by C**-0.5 (full embedding dim), not hs**-0.5.
    scale = 1.0 / (float(c) ** 0.5)

    # Flatten batch rows -> one tall MXU matmul; bf16 operands, f32 accumulation.
    x2 = x_ref[...].reshape(bb * t, c).astype(jnp.bfloat16)            # (BB*T, C)

    # Single fused QKV projection: (BB*T, C) x (C, 3C) -> (BB*T, 3C).
    qkv = jnp.dot(x2, wqkv_ref[...], preferred_element_type=jnp.float32)
    q = qkv[:, 0 * c:1 * c].reshape(bb, t, c)                          # 128-lane-aligned
    k = qkv[:, 1 * c:2 * c].reshape(bb, t, c)                          # slices: free
    v = qkv[:, 2 * c:3 * c].reshape(bb, t, c)

    # Causal mask, built once and reused across heads.
    row = jax.lax.broadcasted_iota(jnp.int32, (t, t), 0)
    col = jax.lax.broadcasted_iota(jnp.int32, (t, t), 1)
    causal = (col <= row)[None]                                        # (1, T, T)

    head_outs = []
    for h in range(num_heads):                                         # static unroll, small H
        lo = h * head_size
        hi = lo + head_size
        qh = q[:, :, lo:hi].astype(jnp.bfloat16)                       # (BB, T, hs)
        kh = k[:, :, lo:hi].astype(jnp.bfloat16)
        vh = v[:, :, lo:hi].astype(jnp.bfloat16)

        # Batched q @ k^T without materializing a transpose (contract last axes).
        s = jnp.einsum('bqd,bkd->bqk', qh, kh,
                       preferred_element_type=jnp.float32) * scale     # (BB, T, T) f32

        # Large finite negative instead of -inf (robust even if a row were fully masked).
        s = jnp.where(causal, s, -1e30)
        s = s - jnp.max(s, axis=-1, keepdims=True)
        p = jnp.exp(s)
        # Normalize with an EUP approx reciprocal (off the VALU divide slot).
        p = p * pl.reciprocal(jnp.sum(p, axis=-1, keepdims=True), approx=True)

        head_outs.append(
            jnp.einsum('bqk,bkd->bqd', p.astype(jnp.bfloat16), vh,
                       preferred_element_type=jnp.float32))            # (BB, T, hs) f32

    # Concat heads along the lane dim -> (BB*T, C); single dense projection matmul.
    cat = jnp.concatenate(head_outs, axis=-1).reshape(bb * t, c)
    y = jnp.dot(cat.astype(jnp.bfloat16), wp_ref[...],
                preferred_element_type=jnp.float32) + b_ref[...]       # (BB*T, C) f32
    o_ref[...] = y.reshape(bb, t, c).astype(o_ref.dtype)


def prepare_params(wq, wk, wv, w_proj_t, b_proj):
    """One-time (outside jit / at init) restack of per-head weights into fused bf16 mats.

    wq/wk/wv: (H, C, hs); w_proj_t: (C, C) (transpose of nn.Linear weight); b_proj: (C,).
    Returns (w_qkv (C,3C) bf16, w_proj_t (C,C) bf16, b_proj (1,C) f32).
    """
    H, C, hs = wq.shape

    def stack(w):   # (H, C, hs) -> (C, H*hs), head h in columns [h*hs, (h+1)*hs)
        return jnp.transpose(w, (1, 0, 2)).reshape(C, H * hs)

    w_qkv = jnp.concatenate([stack(wq), stack(wk), stack(wv)], axis=1)  # (C, 3C)
    return (w_qkv.astype(jnp.bfloat16),
            w_proj_t.astype(jnp.bfloat16),
            b_proj.reshape(1, C).astype(jnp.float32))


def _pick_batch_block(B, T, target_rows=256):
    """Largest divisor BB of B with BB*T <= target_rows (>=1)."""
    bb = max(1, min(B, max(1, target_rows // T)))
    while B % bb:
        bb -= 1
    return bb


@functools.partial(jax.jit, static_argnames=("num_heads",))
def multiple_heads_forward(x, w_qkv, w_proj_t, b_proj, *, num_heads):
    """x: (B, T, C) f32; w_qkv: (C, 3C) bf16; w_proj_t: (C, C) bf16; b_proj: (1, C) f32."""
    B, T, C = x.shape
    hs = C // num_heads
    bb = _pick_batch_block(B, T)

    kernel = functools.partial(_fused_mha_kernel, num_heads=num_heads, head_size=hs)

    return pl.pallas_call(
        kernel,
        out_shape=jax.ShapeDtypeStruct((B, T, C), x.dtype),
        grid_spec=pltpu.PrefetchScalarGridSpec(
            num_scalar_prefetch=0,
            grid=(B // bb,),
            in_specs=[
                pl.BlockSpec((bb, T, C), lambda b: (b, 0, 0)),   # x (BB batch rows)
                pl.BlockSpec((C, 3 * C), lambda b: (0, 0)),      # fused W_qkv (bf16)
                pl.BlockSpec((C, C), lambda b: (0, 0)),          # W_proj^T (bf16)
                pl.BlockSpec((1, C), lambda b: (0, 0)),          # bias (f32)
            ],
            out_specs=pl.BlockSpec((bb, T, C), lambda b: (b, 0, 0)),
        ),
        compiler_params=pltpu.CompilerParams(
            dimension_semantics=("parallel",)),
    )(x, w_qkv, w_proj_t, b_proj)


def _reference(x, wq, wk, wv, w_proj_t, b_proj):
    """Pure-JAX f32 reference of the PyTorch forward (eval mode, dropout = identity)."""
    B, T, C = x.shape
    q = jnp.einsum("btc,hcd->bhtd", x, wq)
    k = jnp.einsum("btc,hcd->bhtd", x, wk)
    v = jnp.einsum("btc,hcd->bhtd", x, wv)
    s = jnp.einsum("bhtd,bhsd->bhts", q, k) * (C ** -0.5)
    mask = jnp.tril(jnp.ones((T, T), dtype=bool))
    s = jnp.where(mask[None, None], s, -jnp.inf)
    p = jax.nn.softmax(s, axis=-1)
    o = jnp.einsum("bhts,bhsd->bhtd", p, v)
    cat = jnp.transpose(o, (0, 2, 1, 3)).reshape(B, T, C)
    return cat @ w_proj_t + b_proj


if __name__ == "__main__":
    # Small shapes consistent with the module (num_embeddings = num_heads * head_size);
    # C = 128 keeps weight / output lane dims register-dense.
    B, T = 2, 16
    num_heads, head_size = 4, 32
    num_embeddings = num_heads * head_size  # 128

    key = jax.random.PRNGKey(0)
    kx, kq, kk, kv, kp, kb = jax.random.split(key, 6)

    x = jax.random.normal(kx, (B, T, num_embeddings), dtype=jnp.float32)

    bound = 1.0 / (num_embeddings ** 0.5)
    wq = jax.random.uniform(kq, (num_heads, num_embeddings, head_size),
                            minval=-bound, maxval=bound, dtype=jnp.float32)
    wk = jax.random.uniform(kk, (num_heads, num_embeddings, head_size),
                            minval=-bound, maxval=bound, dtype=jnp.float32)
    wv = jax.random.uniform(kv, (num_heads, num_embeddings, head_size),
                            minval=-bound, maxval=bound, dtype=jnp.float32)
    # nn.Linear(num_embeddings, num_embeddings): weight (out, in); we store its transpose.
    w_proj_t = jax.random.uniform(kp, (num_embeddings, num_embeddings),
                                  minval=-bound, maxval=bound, dtype=jnp.float32)
    b_proj = jax.random.uniform(kb, (num_embeddings,),
                                minval=-bound, maxval=bound, dtype=jnp.float32)

    # One-time parameter prep (outside jit): fuse + restack + cast weights to bf16.
    w_qkv_bf16, w_proj_bf16, b_proj_prep = prepare_params(wq, wk, wv, w_proj_t, b_proj)

    out = multiple_heads_forward(x, w_qkv_bf16, w_proj_bf16, b_proj_prep,
                                 num_heads=num_heads)
    out = jax.block_until_ready(out)

    ref = _reference(x, wq, wk, wv, w_proj_t, b_proj)
    assert out.shape == (B, T, num_embeddings)
    # bf16 MXU operands + approx reciprocal -> loosened tolerance vs f32 reference.
    assert jnp.allclose(out, ref, atol=2e-2, rtol=2e-2), "mismatch vs JAX reference"

    print("KERNEL_OK")
</pallas_src>

<mosaic_0001>
module attributes {stable_mosaic.version = 11 : i64} {
  func.func @_fused_mha_kernel(%arg0: i32, %arg1: memref<2x16x128xf32, #tpu.memory_space<vmem>>, %arg2: memref<128x384xbf16, #tpu.memory_space<vmem>>, %arg3: memref<128x128xbf16, #tpu.memory_space<vmem>>, %arg4: memref<1x128xf32, #tpu.memory_space<vmem>>, %arg5: memref<2x16x128xf32, #tpu.memory_space<vmem>>) attributes {dimension_semantics = [#tpu.dimension_semantics<parallel>], iteration_bounds = array<i64: 1>, scalar_prefetch = 0 : i64, scratch_operands = 0 : i64, tpu.core_type = #tpu.core_type<tc>, window_params = [{transform_indices = @transform_0, window_bounds = array<i64: 2, 16, 128>}, {pipeline_mode = #tpu.pipeline_mode<synchronous>, transform_indices = @transform_1, window_bounds = array<i64: 128, 384>}, {pipeline_mode = #tpu.pipeline_mode<synchronous>, transform_indices = @transform_2, window_bounds = array<i64: 128, 128>}, {pipeline_mode = #tpu.pipeline_mode<synchronous>, transform_indices = @transform_3, window_bounds = array<i64: 1, 128>}, {transform_indices = @transform_4, window_bounds = array<i64: 2, 16, 128>}]} {
    %c0 = arith.constant 0 : index
    %c0_0 = arith.constant 0 : index
    %c0_1 = arith.constant 0 : index
    %0 = vector.load %arg1[%c0, %c0_0, %c0_1] : memref<2x16x128xf32, #tpu.memory_space<vmem>>, vector<2x16x128xf32>
    %1 = vector.shape_cast %0 : vector<2x16x128xf32> to vector<32x128xf32>
    %2 = arith.truncf %1 : vector<32x128xf32> to vector<32x128xbf16>
    %c0_2 = arith.constant 0 : index
    %c0_3 = arith.constant 0 : index
    %3 = vector.load %arg2[%c0_2, %c0_3] : memref<128x384xbf16, #tpu.memory_space<vmem>>, vector<128x384xbf16>
    %cst = arith.constant dense<0.000000e+00> : vector<32x384xf32>
    %4 = tpu.matmul %2, %3, %cst {dimension_numbers = #tpu.dot_dimension_numbers<[1], [0], [0], [1], [0, 0, 1, 1], [], []>} : vector<32x128xbf16>, vector<128x384xbf16>, vector<32x384xf32> -> vector<32x384xf32>
    %5 = vector.extract_strided_slice %4 {offsets = [0, 0], sizes = [32, 128], strides = [1, 1]} : vector<32x384xf32> to vector<32x128xf32>
    %6 = vector.shape_cast %5 : vector<32x128xf32> to vector<2x16x128xf32>
    %7 = vector.extract_strided_slice %4 {offsets = [0, 128], sizes = [32, 128], strides = [1, 1]} : vector<32x384xf32> to vector<32x128xf32>
    %8 = vector.shape_cast %7 : vector<32x128xf32> to vector<2x16x128xf32>
    %9 = vector.extract_strided_slice %4 {offsets = [0, 256], sizes = [32, 128], strides = [1, 1]} : vector<32x384xf32> to vector<32x128xf32>
    %10 = vector.shape_cast %9 : vector<32x128xf32> to vector<2x16x128xf32>
    %11 = tpu.iota {dimensions = array<i32: 0>} : vector<16x16xi32>
    %12 = tpu.iota {dimensions = array<i32: 1>} : vector<16x16xi32>
    %13 = arith.cmpi sle, %12, %11 : vector<16x16xi32>
    %14 = vector.shape_cast %13 : vector<16x16xi1> to vector<1x16x16xi1>
    %15 = vector.extract_strided_slice %6 {offsets = [0, 0, 0], sizes = [2, 16, 32], strides = [1, 1, 1]} : vector<2x16x128xf32> to vector<2x16x32xf32>
    %16 = arith.truncf %15 : vector<2x16x32xf32> to vector<2x16x32xbf16>
    %17 = vector.extract_strided_slice %8 {offsets = [0, 0, 0], sizes = [2, 16, 32], strides = [1, 1, 1]} : vector<2x16x128xf32> to vector<2x16x32xf32>
    %18 = arith.truncf %17 : vector<2x16x32xf32> to vector<2x16x32xbf16>
    %19 = vector.extract_strided_slice %10 {offsets = [0, 0, 0], sizes = [2, 16, 32], strides = [1, 1, 1]} : vector<2x16x128xf32> to vector<2x16x32xf32>
    %20 = arith.truncf %19 : vector<2x16x32xf32> to vector<2x16x32xbf16>
    "tpu.trace_start"() <{level = 10 : i32, message = "bqd,bkd->bqk"}> : () -> ()
    %cst_4 = arith.constant dense<0.000000e+00> : vector<2x16x16xf32>
    %21 = tpu.matmul %16, %18, %cst_4 {dimension_numbers = #tpu.dot_dimension_numbers<[2], [2], [1], [1], [0, 0, 0, 1, 1, 1], [0], [0]>} : vector<2x16x32xbf16>, vector<2x16x32xbf16>, vector<2x16x16xf32> -> vector<2x16x16xf32>
    "tpu.trace_stop"() : () -> ()
    %cst_5 = arith.constant 0.0883883461 : f32
    %22 = vector.broadcast %cst_5 : f32 to vector<2x16x16xf32>
    %23 = arith.mulf %21, %22 : vector<2x16x16xf32>
    %cst_6 = arith.constant -1.000000e+30 : f32
    %24 = vector.shape_cast %14 : vector<1x16x16xi1> to vector<1x16x16xi1>
    %25 = vector.broadcast %24 : vector<1x16x16xi1> to vector<2x16x16xi1>
    %26 = vector.broadcast %cst_6 : f32 to vector<2x16x16xf32>
    %27 = arith.select %25, %23, %26 : vector<2x16x16xi1>, vector<2x16x16xf32>
    %cst_7 = arith.constant dense<0xFF800000> : vector<2x16xf32>
    %28 = vector.multi_reduction <maximumf>, %27, %cst_7 [2] : vector<2x16x16xf32> to vector<2x16xf32>
    %29 = vector.shape_cast %28 : vector<2x16xf32> to vector<2x16x1xf32>
    %30 = vector.broadcast %29 : vector<2x16x1xf32> to vector<2x16x16xf32>
    %31 = arith.subf %27, %30 : vector<2x16x16xf32>
    %32 = math.exp %31 : vector<2x16x16xf32>
    %cst_8 = arith.constant dense<0.000000e+00> : vector<2x16xf32>
    %33 = vector.multi_reduction <add>, %32, %cst_8 [2] : vector<2x16x16xf32> to vector<2x16xf32>
    %34 = vector.shape_cast %33 : vector<2x16xf32> to vector<2x16x1xf32>
    %35 = tpu.reciprocal %34 {approx = true} : vector<2x16x1xf32> -> vector<2x16x1xf32>
    %36 = vector.broadcast %35 : vector<2x16x1xf32> to vector<2x16x16xf32>
    %37 = arith.mulf %32, %36 : vector<2x16x16xf32>
    %38 = arith.truncf %37 : vector<2x16x16xf32> to vector<2x16x16xbf16>
    "tpu.trace_start"() <{level = 10 : i32, message = "bqk,bkd->bqd"}> : () -> ()
    %cst_9 = arith.constant dense<0.000000e+00> : vector<2x16x32xf32>
    %39 = tpu.matmul %38, %20, %cst_9 {dimension_numbers = #tpu.dot_dimension_numbers<[2], [1], [1], [2], [0, 0, 0, 1, 1, 2], [0], [0]>} : vector<2x16x16xbf16>, vector<2x16x32xbf16>, vector<2x16x32xf32> -> vector<2x16x32xf32>
    "tpu.trace_stop"() : () -> ()
    %40 = vector.extract_strided_slice %6 {offsets = [0, 0, 32], sizes = [2, 16, 32], strides = [1, 1, 1]} : vector<2x16x128xf32> to vector<2x16x32xf32>
    %41 = arith.truncf %40 : vector<2x16x32xf32> to vector<2x16x32xbf16>
    %42 = vector.extract_strided_slice %8 {offsets = [0, 0, 32], sizes = [2, 16, 32], strides = [1, 1, 1]} : vector<2x16x128xf32> to vector<2x16x32xf32>
    %43 = arith.truncf %42 : vector<2x16x32xf32> to vector<2x16x32xbf16>
    %44 = vector.extract_strided_slice %10 {offsets = [0, 0, 32], sizes = [2, 16, 32], strides = [1, 1, 1]} : vector<2x16x128xf32> to vector<2x16x32xf32>
    %45 = arith.truncf %44 : vector<2x16x32xf32> to vector<2x16x32xbf16>
    "tpu.trace_start"() <{level = 10 : i32, message = "bqd,bkd->bqk"}> : () -> ()
    %cst_10 = arith.constant dense<0.000000e+00> : vector<2x16x16xf32>
    %46 = tpu.matmul %41, %43, %cst_10 {dimension_numbers = #tpu.dot_dimension_numbers<[2], [2], [1], [1], [0, 0, 0, 1, 1, 1], [0], [0]>} : vector<2x16x32xbf16>, vector<2x16x32xbf16>, vector<2x16x16xf32> -> vector<2x16x16xf32>
    "tpu.trace_stop"() : () -> ()
    %cst_11 = arith.constant 0.0883883461 : f32
    %47 = vector.broadcast %cst_11 : f32 to vector<2x16x16xf32>
    %48 = arith.mulf %46, %47 : vector<2x16x16xf32>
    %cst_12 = arith.constant -1.000000e+30 : f32
    %49 = vector.shape_cast %14 : vector<1x16x16xi1> to vector<1x16x16xi1>
    %50 = vector.broadcast %49 : vector<1x16x16xi1> to vector<2x16x16xi1>
    %51 = vector.broadcast %cst_12 : f32 to vector<2x16x16xf32>
    %52 = arith.select %50, %48, %51 : vector<2x16x16xi1>, vector<2x16x16xf32>
    %cst_13 = arith.constant dense<0xFF800000> : vector<2x16xf32>
    %53 = vector.multi_reduction <maximumf>, %52, %cst_13 [2] : vector<2x16x16xf32> to vector<2x16xf32>
    %54 = vector.shape_cast %53 : vector<2x16xf32> to vector<2x16x1xf32>
    %55 = vector.broadcast %54 : vector<2x16x1xf32> to vector<2x16x16xf32>
    %56 = arith.subf %52, %55 : vector<2x16x16xf32>
    %57 = math.exp %56 : vector<2x16x16xf32>
    %cst_14 = arith.constant dense<0.000000e+00> : vector<2x16xf32>
    %58 = vector.multi_reduction <add>, %57, %cst_14 [2] : vector<2x16x16xf32> to vector<2x16xf32>
    %59 = vector.shape_cast %58 : vector<2x16xf32> to vector<2x16x1xf32>
    %60 = tpu.reciprocal %59 {approx = true} : vector<2x16x1xf32> -> vector<2x16x1xf32>
    %61 = vector.broadcast %60 : vector<2x16x1xf32> to vector<2x16x16xf32>
    %62 = arith.mulf %57, %61 : vector<2x16x16xf32>
    %63 = arith.truncf %62 : vector<2x16x16xf32> to vector<2x16x16xbf16>
    "tpu.trace_start"() <{level = 10 : i32, message = "bqk,bkd->bqd"}> : () -> ()
    %cst_15 = arith.constant dense<0.000000e+00> : vector<2x16x32xf32>
    %64 = tpu.matmul %63, %45, %cst_15 {dimension_numbers = #tpu.dot_dimension_numbers<[2], [1], [1], [2], [0, 0, 0, 1, 1, 2], [0], [0]>} : vector<2x16x16xbf16>, vector<2x16x32xbf16>, vector<2x16x32xf32> -> vector<2x16x32xf32>
    "tpu.trace_stop"() : () -> ()
    %65 = vector.extract_strided_slice %6 {offsets = [0, 0, 64], sizes = [2, 16, 32], strides = [1, 1, 1]} : vector<2x16x128xf32> to vector<2x16x32xf32>
    %66 = arith.truncf %65 : vector<2x16x32xf32> to vector<2x16x32xbf16>
    %67 = vector.extract_strided_slice %8 {offsets = [0, 0, 64], sizes = [2, 16, 32], strides = [1, 1, 1]} : vector<2x16x128xf32> to vector<2x16x32xf32>
    %68 = arith.truncf %67 : vector<2x16x32xf32> to vector<2x16x32xbf16>
    %69 = vector.extract_strided_slice %10 {offsets = [0, 0, 64], sizes = [2, 16, 32], strides = [1, 1, 1]} : vector<2x16x128xf32> to vector<2x16x32xf32>
    %70 = arith.truncf %69 : vector<2x16x32xf32> to vector<2x16x32xbf16>
    "tpu.trace_start"() <{level = 10 : i32, message = "bqd,bkd->bqk"}> : () -> ()
    %cst_16 = arith.constant dense<0.000000e+00> : vector<2x16x16xf32>
    %71 = tpu.matmul %66, %68, %cst_16 {dimension_numbers = #tpu.dot_dimension_numbers<[2], [2], [1], [1], [0, 0, 0, 1, 1, 1], [0], [0]>} : vector<2x16x32xbf16>, vector<2x16x32xbf16>, vector<2x16x16xf32> -> vector<2x16x16xf32>
    "tpu.trace_stop"() : () -> ()
    %cst_17 = arith.constant 0.0883883461 : f32
    %72 = vector.broadcast %cst_17 : f32 to vector<2x16x16xf32>
    %73 = arith.mulf %71, %72 : vector<2x16x16xf32>
    %cst_18 = arith.constant -1.000000e+30 : f32
    %74 = vector.shape_cast %14 : vector<1x16x16xi1> to vector<1x16x16xi1>
    %75 = vector.broadcast %74 : vector<1x16x16xi1> to vector<2x16x16xi1>
    %76 = vector.broadcast %cst_18 : f32 to vector<2x16x16xf32>
    %77 = arith.select %75, %73, %76 : vector<2x16x16xi1>, vector<2x16x16xf32>
    %cst_19 = arith.constant dense<0xFF800000> : vector<2x16xf32>
    %78 = vector.multi_reduction <maximumf>, %77, %cst_19 [2] : vector<2x16x16xf32> to vector<2x16xf32>
    %79 = vector.shape_cast %78 : vector<2x16xf32> to vector<2x16x1xf32>
    %80 = vector.broadcast %79 : vector<2x16x1xf32> to vector<2x16x16xf32>
    %81 = arith.subf %77, %80 : vector<2x16x16xf32>
    %82 = math.exp %81 : vector<2x16x16xf32>
    %cst_20 = arith.constant dense<0.000000e+00> : vector<2x16xf32>
    %83 = vector.multi_reduction <add>, %82, %cst_20 [2] : vector<2x16x16xf32> to vector<2x16xf32>
    %84 = vector.shape_cast %83 : vector<2x16xf32> to vector<2x16x1xf32>
    %85 = tpu.reciprocal %84 {approx = true} : vector<2x16x1xf32> -> vector<2x16x1xf32>
    %86 = vector.broadcast %85 : vector<2x16x1xf32> to vector<2x16x16xf32>
    %87 = arith.mulf %82, %86 : vector<2x16x16xf32>
    %88 = arith.truncf %87 : vector<2x16x16xf32> to vector<2x16x16xbf16>
    "tpu.trace_start"() <{level = 10 : i32, message = "bqk,bkd->bqd"}> : () -> ()
    %cst_21 = arith.constant dense<0.000000e+00> : vector<2x16x32xf32>
    %89 = tpu.matmul %88, %70, %cst_21 {dimension_numbers = #tpu.dot_dimension_numbers<[2], [1], [1], [2], [0, 0, 0, 1, 1, 2], [0], [0]>} : vector<2x16x16xbf16>, vector<2x16x32xbf16>, vector<2x16x32xf32> -> vector<2x16x32xf32>
    "tpu.trace_stop"() : () -> ()
    %90 = vector.extract_strided_slice %6 {offsets = [0, 0, 96], sizes = [2, 16, 32], strides = [1, 1, 1]} : vector<2x16x128xf32> to vector<2x16x32xf32>
    %91 = arith.truncf %90 : vector<2x16x32xf32> to vector<2x16x32xbf16>
    %92 = vector.extract_strided_slice %8 {offsets = [0, 0, 96], sizes = [2, 16, 32], strides = [1, 1, 1]} : vector<2x16x128xf32> to vector<2x16x32xf32>
    %93 = arith.truncf %92 : vector<2x16x32xf32> to vector<2x16x32xbf16>
    %94 = vector.extract_strided_slice %10 {offsets = [0, 0, 96], sizes = [2, 16, 32], strides = [1, 1, 1]} : vector<2x16x128xf32> to vector<2x16x32xf32>
    %95 = arith.truncf %94 : vector<2x16x32xf32> to vector<2x16x32xbf16>
    "tpu.trace_start"() <{level = 10 : i32, message = "bqd,bkd->bqk"}> : () -> ()
    %cst_22 = arith.constant dense<0.000000e+00> : vector<2x16x16xf32>
    %96 = tpu.matmul %91, %93, %cst_22 {dimension_numbers = #tpu.dot_dimension_numbers<[2], [2], [1], [1], [0, 0, 0, 1, 1, 1], [0], [0]>} : vector<2x16x32xbf16>, vector<2x16x32xbf16>, vector<2x16x16xf32> -> vector<2x16x16xf32>
    "tpu.trace_stop"() : () -> ()
    %cst_23 = arith.constant 0.0883883461 : f32
    %97 = vector.broadcast %cst_23 : f32 to vector<2x16x16xf32>
    %98 = arith.mulf %96, %97 : vector<2x16x16xf32>
    %cst_24 = arith.constant -1.000000e+30 : f32
    %99 = vector.shape_cast %14 : vector<1x16x16xi1> to vector<1x16x16xi1>
    %100 = vector.broadcast %99 : vector<1x16x16xi1> to vector<2x16x16xi1>
    %101 = vector.broadcast %cst_24 : f32 to vector<2x16x16xf32>
    %102 = arith.select %100, %98, %101 : vector<2x16x16xi1>, vector<2x16x16xf32>
    %cst_25 = arith.constant dense<0xFF800000> : vector<2x16xf32>
    %103 = vector.multi_reduction <maximumf>, %102, %cst_25 [2] : vector<2x16x16xf32> to vector<2x16xf32>
    %104 = vector.shape_cast %103 : vector<2x16xf32> to vector<2x16x1xf32>
    %105 = vector.broadcast %104 : vector<2x16x1xf32> to vector<2x16x16xf32>
    %106 = arith.subf %102, %105 : vector<2x16x16xf32>
    %107 = math.exp %106 : vector<2x16x16xf32>
    %cst_26 = arith.constant dense<0.000000e+00> : vector<2x16xf32>
    %108 = vector.multi_reduction <add>, %107, %cst_26 [2] : vector<2x16x16xf32> to vector<2x16xf32>
    %109 = vector.shape_cast %108 : vector<2x16xf32> to vector<2x16x1xf32>
    %110 = tpu.reciprocal %109 {approx = true} : vector<2x16x1xf32> -> vector<2x16x1xf32>
    %111 = vector.broadcast %110 : vector<2x16x1xf32> to vector<2x16x16xf32>
    %112 = arith.mulf %107, %111 : vector<2x16x16xf32>
    %113 = arith.truncf %112 : vector<2x16x16xf32> to vector<2x16x16xbf16>
    "tpu.trace_start"() <{level = 10 : i32, message = "bqk,bkd->bqd"}> : () -> ()
    %cst_27 = arith.constant dense<0.000000e+00> : vector<2x16x32xf32>
    %114 = tpu.matmul %113, %95, %cst_27 {dimension_numbers = #tpu.dot_dimension_numbers<[2], [1], [1], [2], [0, 0, 0, 1, 1, 2], [0], [0]>} : vector<2x16x16xbf16>, vector<2x16x32xbf16>, vector<2x16x32xf32> -> vector<2x16x32xf32>
    "tpu.trace_stop"() : () -> ()
    %115 = tpu.concatenate %39, %64, %89, %114 in 2 : vector<2x16x32xf32>, vector<2x16x32xf32>, vector<2x16x32xf32>, vector<2x16x32xf32> -> vector<2x16x128xf32>
    %116 = vector.shape_cast %115 : vector<2x16x128xf32> to vector<32x128xf32>
    %117 = arith.truncf %116 : vector<32x128xf32> to vector<32x128xbf16>
    %c0_28 = arith.constant 0 : index
    %c0_29 = arith.constant 0 : index
    %118 = vector.load %arg3[%c0_28, %c0_29] : memref<128x128xbf16, #tpu.memory_space<vmem>>, vector<128x128xbf16>
    %cst_30 = arith.constant dense<0.000000e+00> : vector<32x128xf32>
    %119 = tpu.matmul %117, %118, %cst_30 {dimension_numbers = #tpu.dot_dimension_numbers<[1], [0], [0], [1], [0, 0, 1, 1], [], []>} : vector<32x128xbf16>, vector<128x128xbf16>, vector<32x128xf32> -> vector<32x128xf32>
    %c0_31 = arith.constant 0 : index
    %c0_32 = arith.constant 0 : index
    %120 = vector.load %arg4[%c0_31, %c0_32] : memref<1x128xf32, #tpu.memory_space<vmem>>, vector<1x128xf32>
    %121 = vector.broadcast %120 : vector<1x128xf32> to vector<32x128xf32>
    %122 = arith.addf %119, %121 : vector<32x128xf32>
    %123 = vector.shape_cast %122 : vector<32x128xf32> to vector<2x16x128xf32>
    %c0_33 = arith.constant 0 : index
    %c0_34 = arith.constant 0 : index
    %c0_35 = arith.constant 0 : index
    %124 = vector.load %arg5[%c0_33, %c0_34, %c0_35] : memref<2x16x128xf32, #tpu.memory_space<vmem>>, vector<2x16x128xf32>
    tpu.vector_store %arg5[%c0_33, %c0_34, %c0_35], %123 {strides = array<i32>} : memref<2x16x128xf32, #tpu.memory_space<vmem>>, vector<2x16x128xf32>,
    return
  }
  func.func @transform_0(%arg0: i32) -> (i32, i32, i32) {
    %c0_i32 = arith.constant 0 : i32
    %c0_i32_0 = arith.constant 0 : i32
    %c0_i32_1 = arith.constant 0 : i32
    return %arg0, %c0_i32, %c0_i32_0 : i32, i32, i32
  }
  func.func @transform_1(%arg0: i32) -> (i32, i32) {
    %c0_i32 = arith.constant 0 : i32
    %c0_i32_0 = arith.constant 0 : i32
    %c0_i32_1 = arith.constant 0 : i32
    return %c0_i32, %c0_i32_0 : i32, i32
  }
  func.func @transform_2(%arg0: i32) -> (i32, i32) {
    %c0_i32 = arith.constant 0 : i32
    %c0_i32_0 = arith.constant 0 : i32
    %c0_i32_1 = arith.constant 0 : i32
    return %c0_i32, %c0_i32_0 : i32, i32
  }
  func.func @transform_3(%arg0: i32) -> (i32, i32) {
    %c0_i32 = arith.constant 0 : i32
    %c0_i32_0 = arith.constant 0 : i32
    %c0_i32_1 = arith.constant 0 : i32
    return %c0_i32, %c0_i32_0 : i32, i32
  }
  func.func @transform_4(%arg0: i32) -> (i32, i32, i32) {
    %c0_i32 = arith.constant 0 : i32
    %c0_i32_0 = arith.constant 0 : i32
    %c0_i32_1 = arith.constant 0 : i32
    return %arg0, %c0_i32, %c0_i32_0 : i32, i32, i32
  }
}

</mosaic_0001>

<llo_original>
// kernel: multiple_heads_forward.1
$region0: #{multiple_heads_forward.1}
  #allocation0 [shape = 'u32[]', space=smem, size = 0x4, offset = 0x4, fixed_abs, tag = 'smem constant byte address 0x4 - core index']
  #allocation1 [shape = 'u32[144,128]{1,0:T(1,128)}', space=vmem, size = 0x12000, scoped, tag = 'internal scratch']
  %s0 = inlined_call_operand.hbm [shape: f32[2,16,128], index: 0, kind: input, shape index: {}]
  %s1 = inlined_call_operand.hbm [shape: bf16[128,384], index: 1, kind: input, shape index: {}]
  %s2 = inlined_call_operand.hbm [shape: bf16[128,128], index: 2, kind: input, shape index: {}]
  %s3 = inlined_call_operand.vmem [shape: f32[1,128], index: 3, kind: input, shape index: {}]
  %s4 = inlined_call_operand.hbm [shape: f32[2,16,128], index: 4, kind: output, shape index: {}]
  %s5 = sld [smem:[#allocation0]]
  $region38: #{multiple_heads_forward.1} parent=0
    _
  %s7 = ssub.s32 1, %s5
  %s8 = scalar_select 0, %s7, %s5
  $region1: #{multiple_heads_forward.1} parent=0
    #allocation2 [shape = 'u8[16384]{0}', space=vmem, size = 0x4000, scoped, tag = 'input window, operand 0, single buffered']
    #allocation3 [shape = 's32[1]{0}', space=sflag, size = 0x4, scoped, tag = 'scoped memory for multiple_heads_forward.1']
    #allocation4 [shape = 's32[1]{0}', space=sflag, size = 0x4, scoped, tag = 'scoped memory for multiple_heads_forward.1']
    #allocation5 [shape = 'u8[98304]{0}', space=vmem, size = 0x18000, scoped, tag = 'input window, operand 1, single buffered']
    #allocation6 [shape = 's32[1]{0}', space=sflag, size = 0x4, scoped, tag = 'scoped memory for multiple_heads_forward.1']
    #allocation7 [shape = 'u8[32768]{0}', space=vmem, size = 0x8000, scoped, tag = 'input window, operand 2, single buffered']
    #allocation8 [shape = 'u8[16384]{0}', space=vmem, size = 0x4000, scoped, tag = 'output window, operand 0, single buffered']
    %9 = vsyncpa [#allocation3], 0
    %10 = vsyncpa [#allocation6], 0
    %11 = vsyncpa [#allocation4], 0
    // Predicated region
    $region2: #{multiple_heads_forward.1} parent=1 // pred_check
      _
    $region3: #{multiple_heads_forward.1} parent=1 // pred_check_branch
      %13 = sbr.rel (0) target = $region5
    $region4: #{multiple_heads_forward.1} parent=1 // pred_region
      %s15 = ssub.s32 512, 512
      %16 = vsyncadd [#allocation3], %s15
      %s17 = sshll.u32 [#allocation2], 4
      %s18 = int_to_ptr.vmem [resolvable:$true] %s17
      %23 = dma.hbm_to_vmem [thread:$0]  %s0, 512, %s18, [#allocation3], 128, 128, 8
    $region5: #{multiple_heads_forward.1} parent=1 // pred_fallthru
      _
    // Predicated region
    $region6: #{multiple_heads_forward.1} parent=1 // pred_check
      _
    $region7: #{multiple_heads_forward.1} parent=1 // pred_check_branch
      %25 = sbr.rel (0) target = $region9
    $region8: #{multiple_heads_forward.1} parent=1 // pred_region
      %s27 = ssub.s32 3072, 3072
      %28 = vsyncadd [#allocation6], %s27
      %s29 = sshll.u32 [#allocation5], 4
      %s30 = int_to_ptr.vmem [resolvable:$true] %s29
      %35 = dma.hbm_to_vmem [thread:$0]  %s1, 3072, %s30, [#allocation6], 192, 192, 12
    $region9: #{multiple_heads_forward.1} parent=1 // pred_fallthru
      _
    // Predicated region
    $region10: #{multiple_heads_forward.1} parent=1 // pred_check
      _
    $region11: #{multiple_heads_forward.1} parent=1 // pred_check_branch
      %37 = sbr.rel (0) target = $region13
    $region12: #{multiple_heads_forward.1} parent=1 // pred_region
      %s39 = ssub.s32 1024, 1024
      %40 = vsyncadd [#allocation6], %s39
      %s41 = sshll.u32 [#allocation7], 4
      %s42 = int_to_ptr.vmem [resolvable:$true] %s41
      %47 = dma.hbm_to_vmem [thread:$0]  %s2, 1024, %s42, [#allocation6], 64, 64, 4
    $region13: #{multiple_heads_forward.1} parent=1 // pred_fallthru
      _
    // Predicated region
    $region14: #{multiple_heads_forward.1} parent=1 // pred_check
      _
    $region15: #{multiple_heads_forward.1} parent=1 // pred_check_branch
      %49 = sbr.rel (0) target = $region17
    $region16: #{multiple_heads_forward.1} parent=1 // pred_region
      _
    $region17: #{multiple_heads_forward.1} parent=1 // pred_fallthru
      _
    // Predicated region
    $region18: #{multiple_heads_forward.1} parent=1 // pred_check
      _
    $region19: #{multiple_heads_forward.1} parent=1 // pred_check_branch
      %51 = sbr.rel (0) target = $region21
    $region20: #{multiple_heads_forward.1} parent=1 // pred_region
      %52 = dma.done [#allocation3], 512
    $region21: #{multiple_heads_forward.1} parent=1 // pred_fallthru
      _
    // Predicated region
    $region22: #{multiple_heads_forward.1} parent=1 // pred_check
      _
    $region23: #{multiple_heads_forward.1} parent=1 // pred_check_branch
      %54 = sbr.rel (0) target = $region25
    $region24: #{multiple_heads_forward.1} parent=1 // pred_region
      %55 = dma.done [#allocation6], 3072
    $region25: #{multiple_heads_forward.1} parent=1 // pred_fallthru
      _
    // Predicated region
    $region26: #{multiple_heads_forward.1} parent=1 // pred_check
      _
    $region27: #{multiple_heads_forward.1} parent=1 // pred_check_branch
      %57 = sbr.rel (0) target = $region29
    $region28: #{multiple_heads_forward.1} parent=1 // pred_region
      %58 = dma.done [#allocation6], 1024
    $region29: #{multiple_heads_forward.1} parent=1 // pred_fallthru
      _
    %v60 = vld [vmem:[#allocation2] sm:$0xff]
    %v61 = vld [vmem:[#allocation2 + $0x8] sm:$0xff]
    %v62 = vld [vmem:[#allocation2 + $0x10] sm:$0xff]
    %v63 = vld [vmem:[#allocation2 + $0x18] sm:$0xff]
    %v64 = vpack.c.bf16 %v61, %v60
    %v65 = vpack.c.bf16 %v63, %v62
    %v66 = vld [vmem:[#allocation5] sm:$0xff]
    %v67 = vld [vmem:[#allocation5 + $0x8] sm:$0xf]
    %v68 = vld [vmem:[#allocation5 + $0xc] sm:$0xff]
    %v69 = vld [vmem:[#allocation5 + $0x14] sm:$0xf]
    %v70 = vld [vmem:[#allocation5 + $0x18] sm:$0xff]
    %v71 = vld [vmem:[#allocation5 + $0x20] sm:$0xf]
    %v72 = vld [vmem:[#allocation5 + $0x24] sm:$0xff]
    %v73 = vld [vmem:[#allocation5 + $0x2c] sm:$0xf]
    %v74 = vld [vmem:[#allocation5 + $0x30] sm:$0xff]
    %v75 = vld [vmem:[#allocation5 + $0x38] sm:$0xf]
    %v76 = vld [vmem:[#allocation5 + $0x3c] sm:$0xff]
    %v77 = vld [vmem:[#allocation5 + $0x44] sm:$0xf]
    %v78 = vld [vmem:[#allocation5 + $0x48] sm:$0xff]
    %v79 = vld [vmem:[#allocation5 + $0x50] sm:$0xf]
    %v80 = vld [vmem:[#allocation5 + $0x54] sm:$0xff]
    %v81 = vld [vmem:[#allocation5 + $0x5c] sm:$0xf]
    %v82 = vld [vmem:[#allocation5 + $0x60] sm:$0xff]
    %v83 = vld [vmem:[#allocation5 + $0x68] sm:$0xf]
    %v84 = vld [vmem:[#allocation5 + $0x6c] sm:$0xff]
    %v85 = vld [vmem:[#allocation5 + $0x74] sm:$0xf]
    %v86 = vld [vmem:[#allocation5 + $0x78] sm:$0xff]
    %v87 = vld [vmem:[#allocation5 + $0x80] sm:$0xf]
    %v88 = vld [vmem:[#allocation5 + $0x84] sm:$0xff]
    %v89 = vld [vmem:[#allocation5 + $0x8c] sm:$0xf]
    %v90 = vld [vmem:[#allocation5 + $0x90] sm:$0xff]
    %v91 = vld [vmem:[#allocation5 + $0x98] sm:$0xf]
    %v92 = vld [vmem:[#allocation5 + $0x9c] sm:$0xff]
    %v93 = vld [vmem:[#allocation5 + $0xa4] sm:$0xf]
    %v94 = vld [vmem:[#allocation5 + $0xa8] sm:$0xff]
    %v95 = vld [vmem:[#allocation5 + $0xb0] sm:$0xf]
    %v96 = vld [vmem:[#allocation5 + $0xb4] sm:$0xff]
    %v97 = vld [vmem:[#allocation5 + $0xbc] sm:$0xf]
    %v130 = vunpack.c.l.b16 %v66
    %v131 = vunpack.c.h.b16 %v66
    %v132 = vunpack.c.l.b16 %v67
    %v133 = vunpack.c.l.b16 %v68
    %v134 = vunpack.c.h.b16 %v68
    %v135 = vunpack.c.l.b16 %v69
    %v136 = vunpack.c.l.b16 %v70
    %v137 = vunpack.c.h.b16 %v70
    %v138 = vunpack.c.l.b16 %v71
    %v139 = vunpack.c.l.b16 %v72
    %v140 = vunpack.c.h.b16 %v72
    %v141 = vunpack.c.l.b16 %v73
    %v142 = vunpack.c.l.b16 %v74
    %v143 = vunpack.c.h.b16 %v74
    %v144 = vunpack.c.l.b16 %v75
    %v145 = vunpack.c.l.b16 %v76
    %v146 = vunpack.c.h.b16 %v76
    %v147 = vunpack.c.l.b16 %v77
    %v148 = vunpack.c.l.b16 %v78
    %v149 = vunpack.c.h.b16 %v78
    %v150 = vunpack.c.l.b16 %v79
    %v151 = vunpack.c.l.b16 %v80
    %v152 = vunpack.c.h.b16 %v80
    %v153 = vunpack.c.l.b16 %v81
    %v154 = vunpack.c.l.b16 %v82
    %v155 = vunpack.c.h.b16 %v82
    %v156 = vunpack.c.l.b16 %v83
    %v157 = vunpack.c.l.b16 %v84
    %v158 = vunpack.c.h.b16 %v84
    %v159 = vunpack.c.l.b16 %v85
    %v160 = vunpack.c.l.b16 %v86
    %v161 = vunpack.c.h.b16 %v86
    %v162 = vunpack.c.l.b16 %v87
    %v163 = vunpack.c.l.b16 %v88
    %v164 = vunpack.c.h.b16 %v88
    %v165 = vunpack.c.l.b16 %v89
    %v166 = vunpack.c.l.b16 %v90
    %v167 = vunpack.c.h.b16 %v90
    %v168 = vunpack.c.l.b16 %v91
    %v169 = vunpack.c.l.b16 %v92
    %v170 = vunpack.c.h.b16 %v92
    %v171 = vunpack.c.l.b16 %v93
    %v172 = vunpack.c.l.b16 %v94
    %v173 = vunpack.c.h.b16 %v94
    %v174 = vunpack.c.l.b16 %v95
    %v175 = vunpack.c.l.b16 %v96
    %v176 = vunpack.c.h.b16 %v96
    %v177 = vunpack.c.l.b16 %v97
    %v178 = vpack.c.b16 %v133, %v130
    %v179 = vpack.c.b16 %v134, %v131
    %v180 = vpack.c.b16 %v135, %v132
    %v181 = vpack.c.b16 %v139, %v136
    %v182 = vpack.c.b16 %v140, %v137
    %v183 = vpack.c.b16 %v141, %v138
    %v184 = vpack.c.b16 %v145, %v142
    %v185 = vpack.c.b16 %v146, %v143
    %v186 = vpack.c.b16 %v147, %v144
    %v187 = vpack.c.b16 %v151, %v148
    %v188 = vpack.c.b16 %v152, %v149
    %v189 = vpack.c.b16 %v153, %v150
    %v190 = vpack.c.b16 %v157, %v154
    %v191 = vpack.c.b16 %v158, %v155
    %v192 = vpack.c.b16 %v159, %v156
    %v193 = vpack.c.b16 %v163, %v160
    %v194 = vpack.c.b16 %v164, %v161
    %v195 = vpack.c.b16 %v165, %v162
    %v196 = vpack.c.b16 %v169, %v166
    %v197 = vpack.c.b16 %v170, %v167
    %v198 = vpack.c.b16 %v171, %v168
    %v199 = vpack.c.b16 %v175, %v172
    %v200 = vpack.c.b16 %v176, %v173
    %v201 = vpack.c.b16 %v177, %v174
    %226 = vmatprep.subr.bf16.mxu0 %v179
    %227 = vmatpush1.bf16.msra.mxu0 %v178
    %228 = vmatprep.subr.bf16.mxu0 %v182
    %229 = vmatpush1.bf16.msra.mxu0 %v181
    %230 = vmatprep.subr.bf16.mxu0 %v185
    %231 = vmatpush1.bf16.msra.mxu0 %v184
    %232 = vmatprep.subr.bf16.mxu0 %v188
    %233 = vmatpush1.bf16.msra.mxu0 %v187
    %234 = vmatprep.subr.bf16.mxu0 %v191
    %235 = vmatpush1.bf16.msra.mxu0 %v190
    %236 = vmatprep.subr.bf16.mxu0 %v194
    %237 = vmatpush1.bf16.msra.mxu0 %v193
    %238 = vmatprep.subr.bf16.mxu0 %v197
    %239 = vmatpush1.bf16.msra.mxu0 %v196
    %240 = vmatprep.subr.bf16.mxu0 %v200
    %241 = vmatpush1.bf16.msra.mxu0 %v199
    %242 = vmatprep.subr.bf16.mxu0 0
    %243 = vmatpush1.bf16.msra.mxu0 0
    %244 = vmatprep.subr.bf16.mxu0 0
    %245 = vmatpush1.bf16.msra.mxu0 0
    %246 = vmatprep.subr.bf16.mxu0 0
    %247 = vmatpush1.bf16.msra.mxu0 0
    %248 = vmatprep.subr.bf16.mxu0 0
    %249 = vmatpush1.bf16.msra.mxu0 0
    %250 = vmatprep.subr.bf16.mxu0 0
    %251 = vmatpush1.bf16.msra.mxu0 0
    %252 = vmatprep.subr.bf16.mxu0 0
    %253 = vmatpush1.bf16.msra.mxu0 0
    %254 = vmatprep.subr.bf16.mxu0 0
    %255 = vmatpush1.bf16.msra.mxu0 0
    %256 = vmatprep.subr.bf16.mxu0 0
    %257 = vmatpush1.bf16.msra.mxu0 0
    %258 = vmatprep.mubr.bf16.mxu0 0
    %259 = vmatmul.mubr.bf16.gmra.mrb[0].mxu0 %v64
    %v260 = vpop.f32.mrb[0].mxu0
    %v261 = vadd.f32 0.0, %v260
    %v262 = vpop.f32.mrb[0].mxu0
    %v263 = vadd.f32 0.0, %v262
    %v264 = vpop.f32.mrb[0].mxu0
    %v265 = vadd.f32 0.0, %v264
    %v266 = vpop.f32.mrb[0].mxu0
    %v267 = vadd.f32 0.0, %v266
    %268 = vmatprep.mubr.bf16.mxu0 0
    %269 = vmatmul.mubr.bf16.gmra.mrb[0].mxu0 %v65
    %v270 = vpop.f32.mrb[0].mxu0
    %v271 = vadd.f32 0.0, %v270
    %v272 = vpop.f32.mrb[0].mxu0
    %v273 = vadd.f32 0.0, %v272
    %v274 = vpop.f32.mrb[0].mxu0
    %v275 = vadd.f32 0.0, %v274
    %v276 = vpop.f32.mrb[0].mxu0
    %v277 = vadd.f32 0.0, %v276
    %278 = vdwg.mxu0
    %279 = vmatprep.subr.bf16.mxu0 0
    %280 = vmatpush1.bf16.msra.mxu0 %v180
    %281 = vmatprep.subr.bf16.mxu0 0
    %282 = vmatpush1.bf16.msra.mxu0 %v183
    %283 = vmatprep.subr.bf16.mxu0 0
    %284 = vmatpush1.bf16.msra.mxu0 %v186
    %285 = vmatprep.subr.bf16.mxu0 0
    %286 = vmatpush1.bf16.msra.mxu0 %v189
    %287 = vmatprep.subr.bf16.mxu0 0
    %288 = vmatpush1.bf16.msra.mxu0 %v192
    %289 = vmatprep.subr.bf16.mxu0 0
    %290 = vmatpush1.bf16.msra.mxu0 %v195
    %291 = vmatprep.subr.bf16.mxu0 0
    %292 = vmatpush1.bf16.msra.mxu0 %v198
    %293 = vmatprep.subr.bf16.mxu0 0
    %294 = vmatpush1.bf16.msra.mxu0 %v201
    %295 = vmatprep.subr.bf16.mxu0 0
    %296 = vmatpush1.bf16.msra.mxu0 0
    %297 = vmatprep.subr.bf16.mxu0 0
    %298 = vmatpush1.bf16.msra.mxu0 0
    %299 = vmatprep.subr.bf16.mxu0 0
    %300 = vmatpush1.bf16.msra.mxu0 0
    %301 = vmatprep.subr.bf16.mxu0 0
    %302 = vmatpush1.bf16.msra.mxu0 0
    %303 = vmatprep.subr.bf16.mxu0 0
    %304 = vmatpush1.bf16.msra.mxu0 0
    %305 = vmatprep.subr.bf16.mxu0 0
    %306 = vmatpush1.bf16.msra.mxu0 0
    %307 = vmatprep.subr.bf16.mxu0 0
    %308 = vmatpush1.bf16.msra.mxu0 0
    %309 = vmatprep.subr.bf16.mxu0 0
    %310 = vmatpush1.bf16.msra.mxu0 0
    %311 = vmatprep.mubr.bf16.mxu0 0
    %312 = vmatmul.mubr.bf16.gmra.mrb[0].mxu0 %v64
    %v313 = vpop.f32.mrb[0].mxu0
    %v314 = vadd.f32 0.0, %v313
    %v315 = vpop.f32.mrb[0].mxu0
    %v316 = vpop.f32.mrb[0].mxu0
    %v317 = vadd.f32 0.0, %v316
    %v318 = vpop.f32.mrb[0].mxu0
    %319 = vmatprep.mubr.bf16.mxu0 0
    %320 = vmatmul.mubr.bf16.gmra.mrb[0].mxu0 %v65
    %v321 = vpop.f32.mrb[0].mxu0
    %v322 = vadd.f32 0.0, %v321
    %v323 = vpop.f32.mrb[0].mxu0
    %v324 = vpop.f32.mrb[0].mxu0
    %v325 = vadd.f32 0.0, %v324
    %v326 = vpop.f32.mrb[0].mxu0
    %327 = vdwg.mxu0
    %v328 = vlaneseq
    %v329 = vshrl.u32 %v328, 7
    %v330 = vadd.s32 %v329, 8
    %v331 = vlaneseq
    %v332 = vand.u32 %v331, 127
    %vm333 = vcmp.le.s32.totalorder %v332, %v329
    %vm334 = vcmp.le.s32.totalorder %v332, %v330
    %v335 = vpack.c.bf16 %v265, %v261
    %v336 = vpack.c.bf16 %v275, %v271
    %v337 = vpack.c.bf16 %v267, %v263
    %v338 = vpack.c.bf16 %v277, %v273
    %v339 = vpack.c.bf16 %v317, %v314
    %v340 = vpack.c.bf16 %v325, %v322
    %vm341 = vcmask 261120
    %v343 = vsel %vm341, %v335, 0
    %v346 = vsel %vm341, %v337, 0
    %348 = vmatprep.subr.bf16.mxu0 0
    %349 = vmatpush1.bf16.xpose.msra.mxu0 %v346
    %350 = vmatprep.subr.bf16.mxu0 0
    %351 = vmatpush1.bf16.xpose.msra.mxu0 0
    %352 = vmatprep.subr.bf16.mxu0 0
    %353 = vmatpush1.bf16.xpose.msra.mxu0 0
    %354 = vmatprep.subr.bf16.mxu0 0
    %355 = vmatpush1.bf16.xpose.msra.mxu0 0
    %356 = vmatprep.subr.bf16.mxu0 0
    %357 = vmatpush1.bf16.xpose.msra.mxu0 0
    %358 = vmatprep.subr.bf16.mxu0 0
    %359 = vmatpush1.bf16.xpose.msra.mxu0 0
    %360 = vmatprep.subr.bf16.mxu0 0
    %361 = vmatpush1.bf16.xpose.msra.mxu0 0
    %362 = vmatprep.subr.bf16.mxu0 0
    %363 = vmatpush1.bf16.xpose.msra.mxu0 0
    %364 = vmatprep.subr.bf16.mxu0 0
    %365 = vmatpush1.bf16.xpose.msra.mxu0 0
    %366 = vmatprep.subr.bf16.mxu0 0
    %367 = vmatpush1.bf16.xpose.msra.mxu0 0
    %368 = vmatprep.subr.bf16.mxu0 0
    %369 = vmatpush1.bf16.xpose.msra.mxu0 0
    %370 = vmatprep.subr.bf16.mxu0 0
    %371 = vmatpush1.bf16.xpose.msra.mxu0 0
    %372 = vmatprep.subr.bf16.mxu0 0
    %373 = vmatpush1.bf16.xpose.msra.mxu0 0
    %374 = vmatprep.subr.bf16.mxu0 0
    %375 = vmatpush1.bf16.xpose.msra.mxu0 0
    %376 = vmatprep.subr.bf16.mxu0 0
    %377 = vmatpush1.bf16.xpose.msra.mxu0 0
    %378 = vmatprep.subr.bf16.mxu0 0
    %379 = vmatpush1.bf16.xpose.msra.mxu0 0
    %380 = vmatprep.mubr.bf16.mxu0 0
    %381 = vmatmul.mubr.bf16.gmra.mrb[0].mxu0 %v343
    %v382 = vpop.f32.mrb[0].mxu0
    %v383 = vadd.f32 0.0, %v382
    %v384 = vpop.f32.mrb[0].mxu0
    %v385 = vpop.f32.mrb[0].mxu0
    %v386 = vadd.f32 0.0, %v385
    %v387 = vpop.f32.mrb[0].mxu0
    %388 = vdwg.mxu0
    %v390 = vsel %vm341, %v336, 0
    %v393 = vsel %vm341, %v338, 0
    %395 = vmatprep.subr.bf16.mxu0 0
    %396 = vmatpush1.bf16.xpose.msra.mxu0 %v393
    %397 = vmatprep.subr.bf16.mxu0 0
    %398 = vmatpush1.bf16.xpose.msra.mxu0 0
    %399 = vmatprep.subr.bf16.mxu0 0
    %400 = vmatpush1.bf16.xpose.msra.mxu0 0
    %401 = vmatprep.subr.bf16.mxu0 0
    %402 = vmatpush1.bf16.xpose.msra.mxu0 0
    %403 = vmatprep.subr.bf16.mxu0 0
    %404 = vmatpush1.bf16.xpose.msra.mxu0 0
    %405 = vmatprep.subr.bf16.mxu0 0
    %406 = vmatpush1.bf16.xpose.msra.mxu0 0
    %407 = vmatprep.subr.bf16.mxu0 0
    %408 = vmatpush1.bf16.xpose.msra.mxu0 0
    %409 = vmatprep.subr.bf16.mxu0 0
    %410 = vmatpush1.bf16.xpose.msra.mxu0 0
    %411 = vmatprep.subr.bf16.mxu0 0
    %412 = vmatpush1.bf16.xpose.msra.mxu0 0
    %413 = vmatprep.subr.bf16.mxu0 0
    %414 = vmatpush1.bf16.xpose.msra.mxu0 0
    %415 = vmatprep.subr.bf16.mxu0 0
    %416 = vmatpush1.bf16.xpose.msra.mxu0 0
    %417 = vmatprep.subr.bf16.mxu0 0
    %418 = vmatpush1.bf16.xpose.msra.mxu0 0
    %419 = vmatprep.subr.bf16.mxu0 0
    %420 = vmatpush1.bf16.xpose.msra.mxu0 0
    %421 = vmatprep.subr.bf16.mxu0 0
    %422 = vmatpush1.bf16.xpose.msra.mxu0 0
    %423 = vmatprep.subr.bf16.mxu0 0
    %424 = vmatpush1.bf16.xpose.msra.mxu0 0
    %425 = vmatprep.subr.bf16.mxu0 0
    %426 = vmatpush1.bf16.xpose.msra.mxu0 0
    %427 = vmatprep.mubr.bf16.mxu0 0
    %428 = vmatmul.mubr.bf16.gmra.mrb[0].mxu0 %v390
    %v429 = vpop.f32.mrb[0].mxu0
    %v430 = vadd.f32 0.0, %v429
    %v431 = vpop.f32.mrb[0].mxu0
    %v432 = vpop.f32.mrb[0].mxu0
    %v433 = vadd.f32 0.0, %v432
    %v434 = vpop.f32.mrb[0].mxu0
    %435 = vdwg.mxu0
    %v436 = vmul.f32 %v383, 0.088388346
    %v437 = vmul.f32 %v386, 0.088388346
    %v438 = vmul.f32 %v430, 0.088388346
    %v439 = vmul.f32 %v433, 0.088388346
    %v440 = vsel %vm333, 1, 0
    %v441 = vsel %vm334, 1, 0
    %vm442 = vcmp.eq.s32.totalorder %v440, 1
    %vm443 = vcmp.eq.s32.totalorder %v441, 1
    %v444 = vsel %vm442, %v436, -1e+30
    %v445 = vsel %vm443, %v437, -1e+30
    %v446 = vsel %vm442, %v438, -1e+30
    %v447 = vsel %vm443, %v439, -1e+30
    %vm448 = vcmask 130048
    %v449 = vsel %vm448, %v444, -inf
    %450 = vmax.xlane.f32.xlu0 %v449
    %v451 = vpop.xlane.xlu0 %450
    %v452 = vsel %vm448, %v445, -inf
    %453 = vmax.xlane.f32.xlu0 %v452
    %v454 = vpop.xlane.xlu0 %453
    %v455 = vsel %vm448, %v446, -inf
    %456 = vmax.xlane.f32.xlu0 %v455
    %v457 = vpop.xlane.xlu0 %456
    %v458 = vsel %vm448, %v447, -inf
    %459 = vmax.xlane.f32.xlu0 %v458
    %v460 = vpop.xlane.xlu0 %459
    %v461 = vsub.f32 %v444, %v451
    %v462 = vsub.f32 %v445, %v454
    %v463 = vsub.f32 %v446, %v457
    %v464 = vsub.f32 %v447, %v460
    %v465 = vmul.f32 %v461, 1.442695
    %v466 = vpow.pop %v465
    %v467 = vmul.f32 %v462, 1.442695
    %v468 = vpow.pop %v467
    %v469 = vmul.f32 %v463, 1.442695
    %v470 = vpow.pop %v469
    %v471 = vmul.f32 %v464, 1.442695
    %v472 = vpow.pop %v471
    %v473 = vsel %vm448, %v466, 0.0
    %474 = vadd.xlane.f32.xlu0 %v473
    %v475 = vpop.xlane.xlu0 %474
    %v476 = vsel %vm448, %v468, 0.0
    %477 = vadd.xlane.f32.xlu0 %v476
    %v478 = vpop.xlane.xlu0 %477
    %v479 = vsel %vm448, %v470, 0.0
    %480 = vadd.xlane.f32.xlu0 %v479
    %v481 = vpop.xlane.xlu0 %480
    %v482 = vsel %vm448, %v472, 0.0
    %483 = vadd.xlane.f32.xlu0 %v482
    %v484 = vpop.xlane.xlu0 %483
    %v485 = vrcp.pop %v475
    %v486 = vrcp.pop %v478
    %v487 = vrcp.pop %v481
    %v488 = vrcp.pop %v484
    %v489 = vmul.f32 %v466, %v485
    %v490 = vmul.f32 %v468, %v486
    %v491 = vmul.f32 %v470, %v487
    %v492 = vmul.f32 %v472, %v488
    %v493 = vpack.c.bf16 %v490, %v489
    %v494 = vpack.c.bf16 %v492, %v491
    %v496 = vsel %vm448, %v493, 0
    %498 = vmatprep.subr.bf16.mxu0 0
    %499 = vmatpush1.bf16.msra.mxu0 %v339
    %500 = vmatprep.subr.bf16.mxu0 0
    %501 = vmatpush1.bf16.msra.mxu0 0
    %502 = vmatprep.subr.bf16.mxu0 0
    %503 = vmatpush1.bf16.msra.mxu0 0
    %504 = vmatprep.subr.bf16.mxu0 0
    %505 = vmatpush1.bf16.msra.mxu0 0
    %506 = vmatprep.subr.bf16.mxu0 0
    %507 = vmatpush1.bf16.msra.mxu0 0
    %508 = vmatprep.subr.bf16.mxu0 0
    %509 = vmatpush1.bf16.msra.mxu0 0
    %510 = vmatprep.subr.bf16.mxu0 0
    %511 = vmatpush1.bf16.msra.mxu0 0
    %512 = vmatprep.subr.bf16.mxu0 0
    %513 = vmatpush1.bf16.msra.mxu0 0
    %514 = vmatprep.subr.bf16.mxu0 0
    %515 = vmatpush1.bf16.msra.mxu0 0
    %516 = vmatprep.subr.bf16.mxu0 0
    %517 = vmatpush1.bf16.msra.mxu0 0
    %518 = vmatprep.subr.bf16.mxu0 0
    %519 = vmatpush1.bf16.msra.mxu0 0
    %520 = vmatprep.subr.bf16.mxu0 0
    %521 = vmatpush1.bf16.msra.mxu0 0
    %522 = vmatprep.subr.bf16.mxu0 0
    %523 = vmatpush1.bf16.msra.mxu0 0
    %524 = vmatprep.subr.bf16.mxu0 0
    %525 = vmatpush1.bf16.msra.mxu0 0
    %526 = vmatprep.subr.bf16.mxu0 0
    %527 = vmatpush1.bf16.msra.mxu0 0
    %528 = vmatprep.subr.bf16.mxu0 0
    %529 = vmatpush1.bf16.msra.mxu0 0
    %530 = vmatprep.mubr.bf16.mxu0 0
    %531 = vmatmul.mubr.bf16.gmra.mrb[0].mxu0 %v496
    %v532 = vpop.f32.mrb[0].mxu0
    %v533 = vadd.f32 0.0, %v532
    %v534 = vpop.f32.mrb[0].mxu0
    %v535 = vpop.f32.mrb[0].mxu0
    %v536 = vadd.f32 0.0, %v535
    %v537 = vpop.f32.mrb[0].mxu0
    %538 = vdwg.mxu0
    %v540 = vsel %vm448, %v494, 0
    %542 = vmatprep.subr.bf16.mxu0 0
    %543 = vmatpush1.bf16.msra.mxu0 %v340
    %544 = vmatprep.subr.bf16.mxu0 0
    %545 = vmatpush1.bf16.msra.mxu0 0
    %546 = vmatprep.subr.bf16.mxu0 0
    %547 = vmatpush1.bf16.msra.mxu0 0
    %548 = vmatprep.subr.bf16.mxu0 0
    %549 = vmatpush1.bf16.msra.mxu0 0
    %550 = vmatprep.subr.bf16.mxu0 0
    %551 = vmatpush1.bf16.msra.mxu0 0
    %552 = vmatprep.subr.bf16.mxu0 0
    %553 = vmatpush1.bf16.msra.mxu0 0
    %554 = vmatprep.subr.bf16.mxu0 0
    %555 = vmatpush1.bf16.msra.mxu0 0
    %556 = vmatprep.subr.bf16.mxu0 0
    %557 = vmatpush1.bf16.msra.mxu0 0
    %558 = vmatprep.subr.bf16.mxu0 0
    %559 = vmatpush1.bf16.msra.mxu0 0
    %560 = vmatprep.subr.bf16.mxu0 0
    %561 = vmatpush1.bf16.msra.mxu0 0
    %562 = vmatprep.subr.bf16.mxu0 0
    %563 = vmatpush1.bf16.msra.mxu0 0
    %564 = vmatprep.subr.bf16.mxu0 0
    %565 = vmatpush1.bf16.msra.mxu0 0
    %566 = vmatprep.subr.bf16.mxu0 0
    %567 = vmatpush1.bf16.msra.mxu0 0
    %568 = vmatprep.subr.bf16.mxu0 0
    %569 = vmatpush1.bf16.msra.mxu0 0
    %570 = vmatprep.subr.bf16.mxu0 0
    %571 = vmatpush1.bf16.msra.mxu0 0
    %572 = vmatprep.subr.bf16.mxu0 0
    %573 = vmatpush1.bf16.msra.mxu0 0
    %574 = vmatprep.mubr.bf16.mxu0 0
    %575 = vmatmul.mubr.bf16.gmra.mrb[0].mxu0 %v540
    %v576 = vpop.f32.mrb[0].mxu0
    %v577 = vadd.f32 0.0, %v576
    %v578 = vpop.f32.mrb[0].mxu0
    %v579 = vpop.f32.mrb[0].mxu0
    %v580 = vadd.f32 0.0, %v579
    %v581 = vpop.f32.mrb[0].mxu0
    %582 = vdwg.mxu0
    %584 = vrot.lane.b32.xlu0 %v335, 96
    %v585 = vpop.permute.xlu0 %584
    %587 = vrot.lane.b32.xlu0 %v337, 96
    %v588 = vpop.permute.xlu0 %587
    %v590 = vsel %vm341, %v585, 0
    %v593 = vsel %vm341, %v588, 0
    %595 = vmatprep.subr.bf16.mxu0 0
    %596 = vmatpush1.bf16.xpose.msra.mxu0 %v593
    %597 = vmatprep.subr.bf16.mxu0 0
    %598 = vmatpush1.bf16.xpose.msra.mxu0 0
    %599 = vmatprep.subr.bf16.mxu0 0
    %600 = vmatpush1.bf16.xpose.msra.mxu0 0
    %601 = vmatprep.subr.bf16.mxu0 0
    %602 = vmatpush1.bf16.xpose.msra.mxu0 0
    %603 = vmatprep.subr.bf16.mxu0 0
    %604 = vmatpush1.bf16.xpose.msra.mxu0 0
    %605 = vmatprep.subr.bf16.mxu0 0
    %606 = vmatpush1.bf16.xpose.msra.mxu0 0
    %607 = vmatprep.subr.bf16.mxu0 0
    %608 = vmatpush1.bf16.xpose.msra.mxu0 0
    %609 = vmatprep.subr.bf16.mxu0 0
    %610 = vmatpush1.bf16.xpose.msra.mxu0 0
    %611 = vmatprep.subr.bf16.mxu0 0
    %612 = vmatpush1.bf16.xpose.msra.mxu0 0
    %613 = vmatprep.subr.bf16.mxu0 0
    %614 = vmatpush1.bf16.xpose.msra.mxu0 0
    %615 = vmatprep.subr.bf16.mxu0 0
    %616 = vmatpush1.bf16.xpose.msra.mxu0 0
    %617 = vmatprep.subr.bf16.mxu0 0
    %618 = vmatpush1.bf16.xpose.msra.mxu0 0
    %619 = vmatprep.subr.bf16.mxu0 0
    %620 = vmatpush1.bf16.xpose.msra.mxu0 0
    %621 = vmatprep.subr.bf16.mxu0 0
    %622 = vmatpush1.bf16.xpose.msra.mxu0 0
    %623 = vmatprep.subr.bf16.mxu0 0
    %624 = vmatpush1.bf16.xpose.msra.mxu0 0
    %625 = vmatprep.subr.bf16.mxu0 0
    %626 = vmatpush1.bf16.xpose.msra.mxu0 0
    %627 = vmatprep.mubr.bf16.mxu0 0
    %628 = vmatmul.mubr.bf16.gmra.mrb[0].mxu0 %v590
    %v629 = vpop.f32.mrb[0].mxu0
    %v630 = vadd.f32 0.0, %v629
    %v631 = vpop.f32.mrb[0].mxu0
    %v632 = vpop.f32.mrb[0].mxu0
    %v633 = vadd.f32 0.0, %v632
    %v634 = vpop.f32.mrb[0].mxu0
    %635 = vdwg.mxu0
    %637 = vrot.lane.b32.xlu0 %v336, 96
    %v638 = vpop.permute.xlu0 %637
    %640 = vrot.lane.b32.xlu0 %v338, 96
    %v641 = vpop.permute.xlu0 %640
    %v643 = vsel %vm341, %v638, 0
    %v646 = vsel %vm341, %v641, 0
    %648 = vmatprep.subr.bf16.mxu0 0
    %649 = vmatpush1.bf16.xpose.msra.mxu0 %v646
    %650 = vmatprep.subr.bf16.mxu0 0
    %651 = vmatpush1.bf16.xpose.msra.mxu0 0
    %652 = vmatprep.subr.bf16.mxu0 0
    %653 = vmatpush1.bf16.xpose.msra.mxu0 0
    %654 = vmatprep.subr.bf16.mxu0 0
    %655 = vmatpush1.bf16.xpose.msra.mxu0 0
    %656 = vmatprep.subr.bf16.mxu0 0
    %657 = vmatpush1.bf16.xpose.msra.mxu0 0
    %658 = vmatprep.subr.bf16.mxu0 0
    %659 = vmatpush1.bf16.xpose.msra.mxu0 0
    %660 = vmatprep.subr.bf16.mxu0 0
    %661 = vmatpush1.bf16.xpose.msra.mxu0 0
    %662 = vmatprep.subr.bf16.mxu0 0
    %663 = vmatpush1.bf16.xpose.msra.mxu0 0
    %664 = vmatprep.subr.bf16.mxu0 0
    %665 = vmatpush1.bf16.xpose.msra.mxu0 0
    %666 = vmatprep.subr.bf16.mxu0 0
    %667 = vmatpush1.bf16.xpose.msra.mxu0 0
    %668 = vmatprep.subr.bf16.mxu0 0
    %669 = vmatpush1.bf16.xpose.msra.mxu0 0
    %670 = vmatprep.subr.bf16.mxu0 0
    %671 = vmatpush1.bf16.xpose.msra.mxu0 0
    %672 = vmatprep.subr.bf16.mxu0 0
    %673 = vmatpush1.bf16.xpose.msra.mxu0 0
    %674 = vmatprep.subr.bf16.mxu0 0
    %675 = vmatpush1.bf16.xpose.msra.mxu0 0
    %676 = vmatprep.subr.bf16.mxu0 0
    %677 = vmatpush1.bf16.xpose.msra.mxu0 0
    %678 = vmatprep.subr.bf16.mxu0 0
    %679 = vmatpush1.bf16.xpose.msra.mxu0 0
    %680 = vmatprep.mubr.bf16.mxu0 0
    %681 = vmatmul.mubr.bf16.gmra.mrb[0].mxu0 %v643
    %v682 = vpop.f32.mrb[0].mxu0
    %v683 = vadd.f32 0.0, %v682
    %v684 = vpop.f32.mrb[0].mxu0
    %v685 = vpop.f32.mrb[0].mxu0
    %v686 = vadd.f32 0.0, %v685
    %v687 = vpop.f32.mrb[0].mxu0
    %688 = vdwg.mxu0
    %v689 = vmul.f32 %v630, 0.088388346
    %v690 = vmul.f32 %v633, 0.088388346
    %v691 = vmul.f32 %v683, 0.088388346
    %v692 = vmul.f32 %v686, 0.088388346
    %v693 = vsel %vm442, %v689, -1e+30
    %v694 = vsel %vm443, %v690, -1e+30
    %v695 = vsel %vm442, %v691, -1e+30
    %v696 = vsel %vm443, %v692, -1e+30
    %v697 = vsel %vm448, %v693, -inf
    %698 = vmax.xlane.f32.xlu0 %v697
    %v699 = vpop.xlane.xlu0 %698
    %v700 = vsel %vm448, %v694, -inf
    %701 = vmax.xlane.f32.xlu0 %v700
    %v702 = vpop.xlane.xlu0 %701
    %v703 = vsel %vm448, %v695, -inf
    %704 = vmax.xlane.f32.xlu0 %v703
    %v705 = vpop.xlane.xlu0 %704
    %v706 = vsel %vm448, %v696, -inf
    %707 = vmax.xlane.f32.xlu0 %v706
    %v708 = vpop.xlane.xlu0 %707
    %v709 = vsub.f32 %v693, %v699
    %v710 = vsub.f32 %v694, %v702
    %v711 = vsub.f32 %v695, %v705
    %v712 = vsub.f32 %v696, %v708
    %v713 = vmul.f32 %v709, 1.442695
    %v714 = vpow.pop %v713
    %v715 = vmul.f32 %v710, 1.442695
    %v716 = vpow.pop %v715
    %v717 = vmul.f32 %v711, 1.442695
    %v718 = vpow.pop %v717
    %v719 = vmul.f32 %v712, 1.442695
    %v720 = vpow.pop %v719
    %v721 = vsel %vm448, %v714, 0.0
    %722 = vadd.xlane.f32.xlu0 %v721
    %v723 = vpop.xlane.xlu0 %722
    %v724 = vsel %vm448, %v716, 0.0
    %725 = vadd.xlane.f32.xlu0 %v724
    %v726 = vpop.xlane.xlu0 %725
    %v727 = vsel %vm448, %v718, 0.0
    %728 = vadd.xlane.f32.xlu0 %v727
    %v729 = vpop.xlane.xlu0 %728
    %v730 = vsel %vm448, %v720, 0.0
    %731 = vadd.xlane.f32.xlu0 %v730
    %v732 = vpop.xlane.xlu0 %731
    %v733 = vrcp.pop %v723
    %v734 = vrcp.pop %v726
    %v735 = vrcp.pop %v729
    %v736 = vrcp.pop %v732
    %v737 = vmul.f32 %v714, %v733
    %v738 = vmul.f32 %v716, %v734
    %v739 = vmul.f32 %v718, %v735
    %v740 = vmul.f32 %v720, %v736
    %v741 = vpack.c.bf16 %v738, %v737
    %v742 = vpack.c.bf16 %v740, %v739
    %744 = vrot.lane.b32.xlu0 %v339, 96
    %v745 = vpop.permute.xlu0 %744
    %v748 = vsel %vm448, %v741, 0
    %750 = vmatprep.subr.bf16.mxu0 0
    %751 = vmatpush1.bf16.msra.mxu0 %v745
    %752 = vmatprep.subr.bf16.mxu0 0
    %753 = vmatpush1.bf16.msra.mxu0 0
    %754 = vmatprep.subr.bf16.mxu0 0
    %755 = vmatpush1.bf16.msra.mxu0 0
    %756 = vmatprep.subr.bf16.mxu0 0
    %757 = vmatpush1.bf16.msra.mxu0 0
    %758 = vmatprep.subr.bf16.mxu0 0
    %759 = vmatpush1.bf16.msra.mxu0 0
    %760 = vmatprep.subr.bf16.mxu0 0
    %761 = vmatpush1.bf16.msra.mxu0 0
    %762 = vmatprep.subr.bf16.mxu0 0
    %763 = vmatpush1.bf16.msra.mxu0 0
    %764 = vmatprep.subr.bf16.mxu0 0
    %765 = vmatpush1.bf16.msra.mxu0 0
    %766 = vmatprep.subr.bf16.mxu0 0
    %767 = vmatpush1.bf16.msra.mxu0 0
    %768 = vmatprep.subr.bf16.mxu0 0
    %769 = vmatpush1.bf16.msra.mxu0 0
    %770 = vmatprep.subr.bf16.mxu0 0
    %771 = vmatpush1.bf16.msra.mxu0 0
    %772 = vmatprep.subr.bf16.mxu0 0
    %773 = vmatpush1.bf16.msra.mxu0 0
    %774 = vmatprep.subr.bf16.mxu0 0
    %775 = vmatpush1.bf16.msra.mxu0 0
    %776 = vmatprep.subr.bf16.mxu0 0
    %777 = vmatpush1.bf16.msra.mxu0 0
    %778 = vmatprep.subr.bf16.mxu0 0
    %779 = vmatpush1.bf16.msra.mxu0 0
    %780 = vmatprep.subr.bf16.mxu0 0
    %781 = vmatpush1.bf16.msra.mxu0 0
    %782 = vmatprep.mubr.bf16.mxu0 0
    %783 = vmatmul.mubr.bf16.gmra.mrb[0].mxu0 %v748
    %v784 = vpop.f32.mrb[0].mxu0
    %v785 = vadd.f32 0.0, %v784
    %v786 = vpop.f32.mrb[0].mxu0
    %v787 = vpop.f32.mrb[0].mxu0
    %v788 = vadd.f32 0.0, %v787
    %v789 = vpop.f32.mrb[0].mxu0
    %790 = vdwg.mxu0
    %792 = vrot.lane.b32.xlu0 %v340, 96
    %v793 = vpop.permute.xlu0 %792
    %v796 = vsel %vm448, %v742, 0
    %798 = vmatprep.subr.bf16.mxu0 0
    %799 = vmatpush1.bf16.msra.mxu0 %v793
    %800 = vmatprep.subr.bf16.mxu0 0
    %801 = vmatpush1.bf16.msra.mxu0 0
    %802 = vmatprep.subr.bf16.mxu0 0
    %803 = vmatpush1.bf16.msra.mxu0 0
    %804 = vmatprep.subr.bf16.mxu0 0
    %805 = vmatpush1.bf16.msra.mxu0 0
    %806 = vmatprep.subr.bf16.mxu0 0
    %807 = vmatpush1.bf16.msra.mxu0 0
    %808 = vmatprep.subr.bf16.mxu0 0
    %809 = vmatpush1.bf16.msra.mxu0 0
    %810 = vmatprep.subr.bf16.mxu0 0
    %811 = vmatpush1.bf16.msra.mxu0 0
    %812 = vmatprep.subr.bf16.mxu0 0
    %813 = vmatpush1.bf16.msra.mxu0 0
    %814 = vmatprep.subr.bf16.mxu0 0
    %815 = vmatpush1.bf16.msra.mxu0 0
    %816 = vmatprep.subr.bf16.mxu0 0
    %817 = vmatpush1.bf16.msra.mxu0 0
    %818 = vmatprep.subr.bf16.mxu0 0
    %819 = vmatpush1.bf16.msra.mxu0 0
    %820 = vmatprep.subr.bf16.mxu0 0
    %821 = vmatpush1.bf16.msra.mxu0 0
    %822 = vmatprep.subr.bf16.mxu0 0
    %823 = vmatpush1.bf16.msra.mxu0 0
    %824 = vmatprep.subr.bf16.mxu0 0
    %825 = vmatpush1.bf16.msra.mxu0 0
    %826 = vmatprep.subr.bf16.mxu0 0
    %827 = vmatpush1.bf16.msra.mxu0 0
    %828 = vmatprep.subr.bf16.mxu0 0
    %829 = vmatpush1.bf16.msra.mxu0 0
    %830 = vmatprep.mubr.bf16.mxu0 0
    %831 = vmatmul.mubr.bf16.gmra.mrb[0].mxu0 %v796
    %v832 = vpop.f32.mrb[0].mxu0
    %v833 = vadd.f32 0.0, %v832
    %v834 = vpop.f32.mrb[0].mxu0
    %v835 = vpop.f32.mrb[0].mxu0
    %v836 = vadd.f32 0.0, %v835
    %v837 = vpop.f32.mrb[0].mxu0
    %838 = vdwg.mxu0
    %839 = vrot.lane.b32.xlu0 %v335, 64
    %v840 = vpop.permute.xlu0 %839
    %841 = vrot.lane.b32.xlu0 %v337, 64
    %v842 = vpop.permute.xlu0 %841
    %v844 = vsel %vm341, %v840, 0
    %v847 = vsel %vm341, %v842, 0
    %849 = vmatprep.subr.bf16.mxu0 0
    %850 = vmatpush1.bf16.xpose.msra.mxu0 %v847
    %851 = vmatprep.subr.bf16.mxu0 0
    %852 = vmatpush1.bf16.xpose.msra.mxu0 0
    %853 = vmatprep.subr.bf16.mxu0 0
    %854 = vmatpush1.bf16.xpose.msra.mxu0 0
    %855 = vmatprep.subr.bf16.mxu0 0
    %856 = vmatpush1.bf16.xpose.msra.mxu0 0
    %857 = vmatprep.subr.bf16.mxu0 0
    %858 = vmatpush1.bf16.xpose.msra.mxu0 0
    %859 = vmatprep.subr.bf16.mxu0 0
    %860 = vmatpush1.bf16.xpose.msra.mxu0 0
    %861 = vmatprep.subr.bf16.mxu0 0
    %862 = vmatpush1.bf16.xpose.msra.mxu0 0
    %863 = vmatprep.subr.bf16.mxu0 0
    %864 = vmatpush1.bf16.xpose.msra.mxu0 0
    %865 = vmatprep.subr.bf16.mxu0 0
    %866 = vmatpush1.bf16.xpose.msra.mxu0 0
    %867 = vmatprep.subr.bf16.mxu0 0
    %868 = vmatpush1.bf16.xpose.msra.mxu0 0
    %869 = vmatprep.subr.bf16.mxu0 0
    %870 = vmatpush1.bf16.xpose.msra.mxu0 0
    %871 = vmatprep.subr.bf16.mxu0 0
    %872 = vmatpush1.bf16.xpose.msra.mxu0 0
    %873 = vmatprep.subr.bf16.mxu0 0
    %874 = vmatpush1.bf16.xpose.msra.mxu0 0
    %875 = vmatprep.subr.bf16.mxu0 0
    %876 = vmatpush1.bf16.xpose.msra.mxu0 0
    %877 = vmatprep.subr.bf16.mxu0 0
    %878 = vmatpush1.bf16.xpose.msra.mxu0 0
    %879 = vmatprep.subr.bf16.mxu0 0
    %880 = vmatpush1.bf16.xpose.msra.mxu0 0
    %881 = vmatprep.mubr.bf16.mxu0 0
    %882 = vmatmul.mubr.bf16.gmra.mrb[0].mxu0 %v844
    %v883 = vpop.f32.mrb[0].mxu0
    %v884 = vadd.f32 0.0, %v883
    %v885 = vpop.f32.mrb[0].mxu0
    %v886 = vpop.f32.mrb[0].mxu0
    %v887 = vadd.f32 0.0, %v886
    %v888 = vpop.f32.mrb[0].mxu0
    %889 = vdwg.mxu0
    %890 = vrot.lane.b32.xlu0 %v336, 64
    %v891 = vpop.permute.xlu0 %890
    %892 = vrot.lane.b32.xlu0 %v338, 64
    %v893 = vpop.permute.xlu0 %892
    %v895 = vsel %vm341, %v891, 0
    %v898 = vsel %vm341, %v893, 0
    %900 = vmatprep.subr.bf16.mxu0 0
    %901 = vmatpush1.bf16.xpose.msra.mxu0 %v898
    %902 = vmatprep.subr.bf16.mxu0 0
    %903 = vmatpush1.bf16.xpose.msra.mxu0 0
    %904 = vmatprep.subr.bf16.mxu0 0
    %905 = vmatpush1.bf16.xpose.msra.mxu0 0
    %906 = vmatprep.subr.bf16.mxu0 0
    %907 = vmatpush1.bf16.xpose.msra.mxu0 0
    %908 = vmatprep.subr.bf16.mxu0 0
    %909 = vmatpush1.bf16.xpose.msra.mxu0 0
    %910 = vmatprep.subr.bf16.mxu0 0
    %911 = vmatpush1.bf16.xpose.msra.mxu0 0
    %912 = vmatprep.subr.bf16.mxu0 0
    %913 = vmatpush1.bf16.xpose.msra.mxu0 0
    %914 = vmatprep.subr.bf16.mxu0 0
    %915 = vmatpush1.bf16.xpose.msra.mxu0 0
    %916 = vmatprep.subr.bf16.mxu0 0
    %917 = vmatpush1.bf16.xpose.msra.mxu0 0
    %918 = vmatprep.subr.bf16.mxu0 0
    %919 = vmatpush1.bf16.xpose.msra.mxu0 0
    %920 = vmatprep.subr.bf16.mxu0 0
    %921 = vmatpush1.bf16.xpose.msra.mxu0 0
    %922 = vmatprep.subr.bf16.mxu0 0
    %923 = vmatpush1.bf16.xpose.msra.mxu0 0
    %924 = vmatprep.subr.bf16.mxu0 0
    %925 = vmatpush1.bf16.xpose.msra.mxu0 0
    %926 = vmatprep.subr.bf16.mxu0 0
    %927 = vmatpush1.bf16.xpose.msra.mxu0 0
    %928 = vmatprep.subr.bf16.mxu0 0
    %929 = vmatpush1.bf16.xpose.msra.mxu0 0
    %930 = vmatprep.subr.bf16.mxu0 0
    %931 = vmatpush1.bf16.xpose.msra.mxu0 0
    %932 = vmatprep.mubr.bf16.mxu0 0
    %933 = vmatmul.mubr.bf16.gmra.mrb[0].mxu0 %v895
    %v934 = vpop.f32.mrb[0].mxu0
    %v935 = vadd.f32 0.0, %v934
    %v936 = vpop.f32.mrb[0].mxu0
    %v937 = vpop.f32.mrb[0].mxu0
    %v938 = vadd.f32 0.0, %v937
    %v939 = vpop.f32.mrb[0].mxu0
    %940 = vdwg.mxu0
    %v941 = vmul.f32 %v884, 0.088388346
    %v942 = vmul.f32 %v887, 0.088388346
    %v943 = vmul.f32 %v935, 0.088388346
    %v944 = vmul.f32 %v938, 0.088388346
    %v945 = vsel %vm442, %v941, -1e+30
    %v946 = vsel %vm443, %v942, -1e+30
    %v947 = vsel %vm442, %v943, -1e+30
    %v948 = vsel %vm443, %v944, -1e+30
    %v949 = vsel %vm448, %v945, -inf
    %950 = vmax.xlane.f32.xlu0 %v949
    %v951 = vpop.xlane.xlu0 %950
    %v952 = vsel %vm448, %v946, -inf
    %953 = vmax.xlane.f32.xlu0 %v952
    %v954 = vpop.xlane.xlu0 %953
    %v955 = vsel %vm448, %v947, -inf
    %956 = vmax.xlane.f32.xlu0 %v955
    %v957 = vpop.xlane.xlu0 %956
    %v958 = vsel %vm448, %v948, -inf
    %959 = vmax.xlane.f32.xlu0 %v958
    %v960 = vpop.xlane.xlu0 %959
    %v961 = vsub.f32 %v945, %v951
    %v962 = vsub.f32 %v946, %v954
    %v963 = vsub.f32 %v947, %v957
    %v964 = vsub.f32 %v948, %v960
    %v965 = vmul.f32 %v961, 1.442695
    %v966 = vpow.pop %v965
    %v967 = vmul.f32 %v962, 1.442695
    %v968 = vpow.pop %v967
    %v969 = vmul.f32 %v963, 1.442695
    %v970 = vpow.pop %v969
    %v971 = vmul.f32 %v964, 1.442695
    %v972 = vpow.pop %v971
    %v973 = vsel %vm448, %v966, 0.0
    %974 = vadd.xlane.f32.xlu0 %v973
    %v975 = vpop.xlane.xlu0 %974
    %v976 = vsel %vm448, %v968, 0.0
    %977 = vadd.xlane.f32.xlu0 %v976
    %v978 = vpop.xlane.xlu0 %977
    %v979 = vsel %vm448, %v970, 0.0
    %980 = vadd.xlane.f32.xlu0 %v979
    %v981 = vpop.xlane.xlu0 %980
    %v982 = vsel %vm448, %v972, 0.0
    %983 = vadd.xlane.f32.xlu0 %v982
    %v984 = vpop.xlane.xlu0 %983
    %v985 = vrcp.pop %v975
    %v986 = vrcp.pop %v978
    %v987 = vrcp.pop %v981
    %v988 = vrcp.pop %v984
    %v989 = vmul.f32 %v966, %v985
    %v990 = vmul.f32 %v968, %v986
    %v991 = vmul.f32 %v970, %v987
    %v992 = vmul.f32 %v972, %v988
    %v993 = vpack.c.bf16 %v990, %v989
    %v994 = vpack.c.bf16 %v992, %v991
    %995 = vrot.lane.b32.xlu0 %v339, 64
    %v996 = vpop.permute.xlu0 %995
    %v999 = vsel %vm448, %v993, 0
    %1001 = vmatprep.subr.bf16.mxu0 0
    %1002 = vmatpush1.bf16.msra.mxu0 %v996
    %1003 = vmatprep.subr.bf16.mxu0 0
    %1004 = vmatpush1.bf16.msra.mxu0 0
    %1005 = vmatprep.subr.bf16.mxu0 0
    %1006 = vmatpush1.bf16.msra.mxu0 0
    %1007 = vmatprep.subr.bf16.mxu0 0
    %1008 = vmatpush1.bf16.msra.mxu0 0
    %1009 = vmatprep.subr.bf16.mxu0 0
    %1010 = vmatpush1.bf16.msra.mxu0 0
    %1011 = vmatprep.subr.bf16.mxu0 0
    %1012 = vmatpush1.bf16.msra.mxu0 0
    %1013 = vmatprep.subr.bf16.mxu0 0
    %1014 = vmatpush1.bf16.msra.mxu0 0
    %1015 = vmatprep.subr.bf16.mxu0 0
    %1016 = vmatpush1.bf16.msra.mxu0 0
    %1017 = vmatprep.subr.bf16.mxu0 0
    %1018 = vmatpush1.bf16.msra.mxu0 0
    %1019 = vmatprep.subr.bf16.mxu0 0
    %1020 = vmatpush1.bf16.msra.mxu0 0
    %1021 = vmatprep.subr.bf16.mxu0 0
    %1022 = vmatpush1.bf16.msra.mxu0 0
    %1023 = vmatprep.subr.bf16.mxu0 0
    %1024 = vmatpush1.bf16.msra.mxu0 0
    %1025 = vmatprep.subr.bf16.mxu0 0
    %1026 = vmatpush1.bf16.msra.mxu0 0
    %1027 = vmatprep.subr.bf16.mxu0 0
    %1028 = vmatpush1.bf16.msra.mxu0 0
    %1029 = vmatprep.subr.bf16.mxu0 0
    %1030 = vmatpush1.bf16.msra.mxu0 0
    %1031 = vmatprep.subr.bf16.mxu0 0
    %1032 = vmatpush1.bf16.msra.mxu0 0
    %1033 = vmatprep.mubr.bf16.mxu0 0
    %1034 = vmatmul.mubr.bf16.gmra.mrb[0].mxu0 %v999
    %v1035 = vpop.f32.mrb[0].mxu0
    %v1036 = vadd.f32 0.0, %v1035
    %v1037 = vpop.f32.mrb[0].mxu0
    %v1038 = vpop.f32.mrb[0].mxu0
    %v1039 = vadd.f32 0.0, %v1038
    %v1040 = vpop.f32.mrb[0].mxu0
    %1041 = vdwg.mxu0
    %1042 = vrot.lane.b32.xlu0 %v340, 64
    %v1043 = vpop.permute.xlu0 %1042
    %v1046 = vsel %vm448, %v994, 0
    %1048 = vmatprep.subr.bf16.mxu0 0
    %1049 = vmatpush1.bf16.msra.mxu0 %v1043
    %1050 = vmatprep.subr.bf16.mxu0 0
    %1051 = vmatpush1.bf16.msra.mxu0 0
    %1052 = vmatprep.subr.bf16.mxu0 0
    %1053 = vmatpush1.bf16.msra.mxu0 0
    %1054 = vmatprep.subr.bf16.mxu0 0
    %1055 = vmatpush1.bf16.msra.mxu0 0
    %1056 = vmatprep.subr.bf16.mxu0 0
    %1057 = vmatpush1.bf16.msra.mxu0 0
    %1058 = vmatprep.subr.bf16.mxu0 0
    %1059 = vmatpush1.bf16.msra.mxu0 0
    %1060 = vmatprep.subr.bf16.mxu0 0
    %1061 = vmatpush1.bf16.msra.mxu0 0
    %1062 = vmatprep.subr.bf16.mxu0 0
    %1063 = vmatpush1.bf16.msra.mxu0 0
    %1064 = vmatprep.subr.bf16.mxu0 0
    %1065 = vmatpush1.bf16.msra.mxu0 0
    %1066 = vmatprep.subr.bf16.mxu0 0
    %1067 = vmatpush1.bf16.msra.mxu0 0
    %1068 = vmatprep.subr.bf16.mxu0 0
    %1069 = vmatpush1.bf16.msra.mxu0 0
    %1070 = vmatprep.subr.bf16.mxu0 0
    %1071 = vmatpush1.bf16.msra.mxu0 0
    %1072 = vmatprep.subr.bf16.mxu0 0
    %1073 = vmatpush1.bf16.msra.mxu0 0
    %1074 = vmatprep.subr.bf16.mxu0 0
    %1075 = vmatpush1.bf16.msra.mxu0 0
    %1076 = vmatprep.subr.bf16.mxu0 0
    %1077 = vmatpush1.bf16.msra.mxu0 0
    %1078 = vmatprep.subr.bf16.mxu0 0
    %1079 = vmatpush1.bf16.msra.mxu0 0
    %1080 = vmatprep.mubr.bf16.mxu0 0
    %1081 = vmatmul.mubr.bf16.gmra.mrb[0].mxu0 %v1046
    %v1082 = vpop.f32.mrb[0].mxu0
    %v1083 = vadd.f32 0.0, %v1082
    %v1084 = vpop.f32.mrb[0].mxu0
    %v1085 = vpop.f32.mrb[0].mxu0
    %v1086 = vadd.f32 0.0, %v1085
    %v1087 = vpop.f32.mrb[0].mxu0
    %1088 = vdwg.mxu0
    %1089 = vrot.lane.b32.xlu0 %v335, 32
    %v1090 = vpop.permute.xlu0 %1089
    %1091 = vrot.lane.b32.xlu0 %v337, 32
    %v1092 = vpop.permute.xlu0 %1091
    %v1094 = vsel %vm341, %v1090, 0
    %v1097 = vsel %vm341, %v1092, 0
    %1099 = vmatprep.subr.bf16.mxu0 0
    %1100 = vmatpush1.bf16.xpose.msra.mxu0 %v1097
    %1101 = vmatprep.subr.bf16.mxu0 0
    %1102 = vmatpush1.bf16.xpose.msra.mxu0 0
    %1103 = vmatprep.subr.bf16.mxu0 0
    %1104 = vmatpush1.bf16.xpose.msra.mxu0 0
    %1105 = vmatprep.subr.bf16.mxu0 0
    %1106 = vmatpush1.bf16.xpose.msra.mxu0 0
    %1107 = vmatprep.subr.bf16.mxu0 0
    %1108 = vmatpush1.bf16.xpose.msra.mxu0 0
    %1109 = vmatprep.subr.bf16.mxu0 0
    %1110 = vmatpush1.bf16.xpose.msra.mxu0 0
    %1111 = vmatprep.subr.bf16.mxu0 0
    %1112 = vmatpush1.bf16.xpose.msra.mxu0 0
    %1113 = vmatprep.subr.bf16.mxu0 0
    %1114 = vmatpush1.bf16.xpose.msra.mxu0 0
    %1115 = vmatprep.subr.bf16.mxu0 0
    %1116 = vmatpush1.bf16.xpose.msra.mxu0 0
    %1117 = vmatprep.subr.bf16.mxu0 0
    %1118 = vmatpush1.bf16.xpose.msra.mxu0 0
    %1119 = vmatprep.subr.bf16.mxu0 0
    %1120 = vmatpush1.bf16.xpose.msra.mxu0 0
    %1121 = vmatprep.subr.bf16.mxu0 0
    %1122 = vmatpush1.bf16.xpose.msra.mxu0 0
    %1123 = vmatprep.subr.bf16.mxu0 0
    %1124 = vmatpush1.bf16.xpose.msra.mxu0 0
    %1125 = vmatprep.subr.bf16.mxu0 0
    %1126 = vmatpush1.bf16.xpose.msra.mxu0 0
    %1127 = vmatprep.subr.bf16.mxu0 0
    %1128 = vmatpush1.bf16.xpose.msra.mxu0 0
    %1129 = vmatprep.subr.bf16.mxu0 0
    %1130 = vmatpush1.bf16.xpose.msra.mxu0 0
    %1131 = vmatprep.mubr.bf16.mxu0 0
    %1132 = vmatmul.mubr.bf16.gmra.mrb[0].mxu0 %v1094
    %v1133 = vpop.f32.mrb[0].mxu0
    %v1134 = vadd.f32 0.0, %v1133
    %v1135 = vpop.f32.mrb[0].mxu0
    %v1136 = vpop.f32.mrb[0].mxu0
    %v1137 = vadd.f32 0.0, %v1136
    %v1138 = vpop.f32.mrb[0].mxu0
    %1139 = vdwg.mxu0
    %1140 = vrot.lane.b32.xlu0 %v336, 32
    %v1141 = vpop.permute.xlu0 %1140
    %1142 = vrot.lane.b32.xlu0 %v338, 32
    %v1143 = vpop.permute.xlu0 %1142
    %v1145 = vsel %vm341, %v1141, 0
    %v1148 = vsel %vm341, %v1143, 0
    %1150 = vmatprep.subr.bf16.mxu0 0
    %1151 = vmatpush1.bf16.xpose.msra.mxu0 %v1148
    %1152 = vmatprep.subr.bf16.mxu0 0
    %1153 = vmatpush1.bf16.xpose.msra.mxu0 0
    %1154 = vmatprep.subr.bf16.mxu0 0
    %1155 = vmatpush1.bf16.xpose.msra.mxu0 0
    %1156 = vmatprep.subr.bf16.mxu0 0
    %1157 = vmatpush1.bf16.xpose.msra.mxu0 0
    %1158 = vmatprep.subr.bf16.mxu0 0
    %1159 = vmatpush1.bf16.xpose.msra.mxu0 0
    %1160 = vmatprep.subr.bf16.mxu0 0
    %1161 = vmatpush1.bf16.xpose.msra.mxu0 0
    %1162 = vmatprep.subr.bf16.mxu0 0
    %1163 = vmatpush1.bf16.xpose.msra.mxu0 0
    %1164 = vmatprep.subr.bf16.mxu0 0
    %1165 = vmatpush1.bf16.xpose.msra.mxu0 0
    %1166 = vmatprep.subr.bf16.mxu0 0
    %1167 = vmatpush1.bf16.xpose.msra.mxu0 0
    %1168 = vmatprep.subr.bf16.mxu0 0
    %1169 = vmatpush1.bf16.xpose.msra.mxu0 0
    %1170 = vmatprep.subr.bf16.mxu0 0
    %1171 = vmatpush1.bf16.xpose.msra.mxu0 0
    %1172 = vmatprep.subr.bf16.mxu0 0
    %1173 = vmatpush1.bf16.xpose.msra.mxu0 0
    %1174 = vmatprep.subr.bf16.mxu0 0
    %1175 = vmatpush1.bf16.xpose.msra.mxu0 0
    %1176 = vmatprep.subr.bf16.mxu0 0
    %1177 = vmatpush1.bf16.xpose.msra.mxu0 0
    %1178 = vmatprep.subr.bf16.mxu0 0
    %1179 = vmatpush1.bf16.xpose.msra.mxu0 0
    %1180 = vmatprep.subr.bf16.mxu0 0
    %1181 = vmatpush1.bf16.xpose.msra.mxu0 0
    %1182 = vmatprep.mubr.bf16.mxu0 0
    %1183 = vmatmul.mubr.bf16.gmra.mrb[0].mxu0 %v1145
    %v1184 = vpop.f32.mrb[0].mxu0
    %v1185 = vadd.f32 0.0, %v1184
    %v1186 = vpop.f32.mrb[0].mxu0
    %v1187 = vpop.f32.mrb[0].mxu0
    %v1188 = vadd.f32 0.0, %v1187
    %v1189 = vpop.f32.mrb[0].mxu0
    %1190 = vdwg.mxu0
    %v1191 = vmul.f32 %v1134, 0.088388346
    %v1192 = vmul.f32 %v1137, 0.088388346
    %v1193 = vmul.f32 %v1185, 0.088388346
    %v1194 = vmul.f32 %v1188, 0.088388346
    %v1195 = vsel %vm442, %v1191, -1e+30
    %v1196 = vsel %vm443, %v1192, -1e+30
    %v1197 = vsel %vm442, %v1193, -1e+30
    %v1198 = vsel %vm443, %v1194, -1e+30
    %v1199 = vsel %vm448, %v1195, -inf
    %1200 = vmax.xlane.f32.xlu0 %v1199
    %v1201 = vpop.xlane.xlu0 %1200
    %v1202 = vsel %vm448, %v1196, -inf
    %1203 = vmax.xlane.f32.xlu0 %v1202
    %v1204 = vpop.xlane.xlu0 %1203
    %v1205 = vsel %vm448, %v1197, -inf
    %1206 = vmax.xlane.f32.xlu0 %v1205
    %v1207 = vpop.xlane.xlu0 %1206
    %v1208 = vsel %vm448, %v1198, -inf
    %1209 = vmax.xlane.f32.xlu0 %v1208
    %v1210 = vpop.xlane.xlu0 %1209
    %v1211 = vsub.f32 %v1195, %v1201
    %v1212 = vsub.f32 %v1196, %v1204
    %v1213 = vsub.f32 %v1197, %v1207
    %v1214 = vsub.f32 %v1198, %v1210
    %v1215 = vmul.f32 %v1211, 1.442695
    %v1216 = vpow.pop %v1215
    %v1217 = vmul.f32 %v1212, 1.442695
    %v1218 = vpow.pop %v1217
    %v1219 = vmul.f32 %v1213, 1.442695
    %v1220 = vpow.pop %v1219
    %v1221 = vmul.f32 %v1214, 1.442695
    %v1222 = vpow.pop %v1221
    %v1223 = vsel %vm448, %v1216, 0.0
    %1224 = vadd.xlane.f32.xlu0 %v1223
    %v1225 = vpop.xlane.xlu0 %1224
    %v1226 = vsel %vm448, %v1218, 0.0
    %1227 = vadd.xlane.f32.xlu0 %v1226
    %v1228 = vpop.xlane.xlu0 %1227
    %v1229 = vsel %vm448, %v1220, 0.0
    %1230 = vadd.xlane.f32.xlu0 %v1229
    %v1231 = vpop.xlane.xlu0 %1230
    %v1232 = vsel %vm448, %v1222, 0.0
    %1233 = vadd.xlane.f32.xlu0 %v1232
    %v1234 = vpop.xlane.xlu0 %1233
    %v1235 = vrcp.pop %v1225
    %v1236 = vrcp.pop %v1228
    %v1237 = vrcp.pop %v1231
    %v1238 = vrcp.pop %v1234
    %v1239 = vmul.f32 %v1216, %v1235
    %v1240 = vmul.f32 %v1218, %v1236
    %v1241 = vmul.f32 %v1220, %v1237
    %v1242 = vmul.f32 %v1222, %v1238
    %v1243 = vpack.c.bf16 %v1240, %v1239
    %v1244 = vpack.c.bf16 %v1242, %v1241
    %1245 = vrot.lane.b32.xlu0 %v339, 32
    %v1246 = vpop.permute.xlu0 %1245
    %v1249 = vsel %vm448, %v1243, 0
    %1251 = vmatprep.subr.bf16.mxu0 0
    %1252 = vmatpush1.bf16.msra.mxu0 %v1246
    %1253 = vmatprep.subr.bf16.mxu0 0
    %1254 = vmatpush1.bf16.msra.mxu0 0
    %1255 = vmatprep.subr.bf16.mxu0 0
    %1256 = vmatpush1.bf16.msra.mxu0 0
    %1257 = vmatprep.subr.bf16.mxu0 0
    %1258 = vmatpush1.bf16.msra.mxu0 0
    %1259 = vmatprep.subr.bf16.mxu0 0
    %1260 = vmatpush1.bf16.msra.mxu0 0
    %1261 = vmatprep.subr.bf16.mxu0 0
    %1262 = vmatpush1.bf16.msra.mxu0 0
    %1263 = vmatprep.subr.bf16.mxu0 0
    %1264 = vmatpush1.bf16.msra.mxu0 0
    %1265 = vmatprep.subr.bf16.mxu0 0
    %1266 = vmatpush1.bf16.msra.mxu0 0
    %1267 = vmatprep.subr.bf16.mxu0 0
    %1268 = vmatpush1.bf16.msra.mxu0 0
    %1269 = vmatprep.subr.bf16.mxu0 0
    %1270 = vmatpush1.bf16.msra.mxu0 0
    %1271 = vmatprep.subr.bf16.mxu0 0
    %1272 = vmatpush1.bf16.msra.mxu0 0
    %1273 = vmatprep.subr.bf16.mxu0 0
    %1274 = vmatpush1.bf16.msra.mxu0 0
    %1275 = vmatprep.subr.bf16.mxu0 0
    %1276 = vmatpush1.bf16.msra.mxu0 0
    %1277 = vmatprep.subr.bf16.mxu0 0
    %1278 = vmatpush1.bf16.msra.mxu0 0
    %1279 = vmatprep.subr.bf16.mxu0 0
    %1280 = vmatpush1.bf16.msra.mxu0 0
    %1281 = vmatprep.subr.bf16.mxu0 0
    %1282 = vmatpush1.bf16.msra.mxu0 0
    %1283 = vmatprep.mubr.bf16.mxu0 0
    %1284 = vmatmul.mubr.bf16.gmra.mrb[0].mxu0 %v1249
    %v1285 = vpop.f32.mrb[0].mxu0
    %v1286 = vadd.f32 0.0, %v1285
    %v1287 = vpop.f32.mrb[0].mxu0
    %v1288 = vpop.f32.mrb[0].mxu0
    %v1289 = vadd.f32 0.0, %v1288
    %v1290 = vpop.f32.mrb[0].mxu0
    %1291 = vdwg.mxu0
    %1292 = vrot.lane.b32.xlu0 %v340, 32
    %v1293 = vpop.permute.xlu0 %1292
    %v1296 = vsel %vm448, %v1244, 0
    %1298 = vmatprep.subr.bf16.mxu0 0
    %1299 = vmatpush1.bf16.msra.mxu0 %v1293
    %1300 = vmatprep.subr.bf16.mxu0 0
    %1301 = vmatpush1.bf16.msra.mxu0 0
    %1302 = vmatprep.subr.bf16.mxu0 0
    %1303 = vmatpush1.bf16.msra.mxu0 0
    %1304 = vmatprep.subr.bf16.mxu0 0
    %1305 = vmatpush1.bf16.msra.mxu0 0
    %1306 = vmatprep.subr.bf16.mxu0 0
    %1307 = vmatpush1.bf16.msra.mxu0 0
    %1308 = vmatprep.subr.bf16.mxu0 0
    %1309 = vmatpush1.bf16.msra.mxu0 0
    %1310 = vmatprep.subr.bf16.mxu0 0
    %1311 = vmatpush1.bf16.msra.mxu0 0
    %1312 = vmatprep.subr.bf16.mxu0 0
    %1313 = vmatpush1.bf16.msra.mxu0 0
    %1314 = vmatprep.subr.bf16.mxu0 0
    %1315 = vmatpush1.bf16.msra.mxu0 0
    %1316 = vmatprep.subr.bf16.mxu0 0
    %1317 = vmatpush1.bf16.msra.mxu0 0
    %1318 = vmatprep.subr.bf16.mxu0 0
    %1319 = vmatpush1.bf16.msra.mxu0 0
    %1320 = vmatprep.subr.bf16.mxu0 0
    %1321 = vmatpush1.bf16.msra.mxu0 0
    %1322 = vmatprep.subr.bf16.mxu0 0
    %1323 = vmatpush1.bf16.msra.mxu0 0
    %1324 = vmatprep.subr.bf16.mxu0 0
    %1325 = vmatpush1.bf16.msra.mxu0 0
    %1326 = vmatprep.subr.bf16.mxu0 0
    %1327 = vmatpush1.bf16.msra.mxu0 0
    %1328 = vmatprep.subr.bf16.mxu0 0
    %1329 = vmatpush1.bf16.msra.mxu0 0
    %1330 = vmatprep.mubr.bf16.mxu0 0
    %1331 = vmatmul.mubr.bf16.gmra.mrb[0].mxu0 %v1296
    %v1332 = vpop.f32.mrb[0].mxu0
    %v1333 = vadd.f32 0.0, %v1332
    %v1334 = vpop.f32.mrb[0].mxu0
    %v1335 = vpop.f32.mrb[0].mxu0
    %v1336 = vadd.f32 0.0, %v1335
    %v1337 = vpop.f32.mrb[0].mxu0
    %1338 = vdwg.mxu0
    %1343 = vrot.lane.b32.xlu0 %v785, 32
    %v1344 = vpop.permute.xlu0 %1343
    %1345 = vrot.lane.b32.xlu0 %v788, 32
    %v1346 = vpop.permute.xlu0 %1345
    %1347 = vrot.lane.b32.xlu0 %v833, 32
    %v1348 = vpop.permute.xlu0 %1347
    %1349 = vrot.lane.b32.xlu0 %v836, 32
    %v1350 = vpop.permute.xlu0 %1349
    %1359 = vrot.lane.b32.xlu0 %v1036, 64
    %v1360 = vpop.permute.xlu0 %1359
    %1361 = vrot.lane.b32.xlu0 %v1039, 64
    %v1362 = vpop.permute.xlu0 %1361
    %1363 = vrot.lane.b32.xlu0 %v1083, 64
    %v1364 = vpop.permute.xlu0 %1363
    %1365 = vrot.lane.b32.xlu0 %v1086, 64
    %v1366 = vpop.permute.xlu0 %1365
    %1375 = vrot.lane.b32.xlu0 %v1286, 96
    %v1376 = vpop.permute.xlu0 %1375
    %1377 = vrot.lane.b32.xlu0 %v1289, 96
    %v1378 = vpop.permute.xlu0 %1377
    %1379 = vrot.lane.b32.xlu0 %v1333, 96
    %v1380 = vpop.permute.xlu0 %1379
    %1381 = vrot.lane.b32.xlu0 %v1336, 96
    %v1382 = vpop.permute.xlu0 %1381
    %v1387 = vsel %vm341, %v533, %v1344
    %v1388 = vsel %vm341, %v536, %v1346
    %v1389 = vsel %vm341, %v577, %v1348
    %v1390 = vsel %vm341, %v580, %v1350
    %vm1391 = vcmask 523264
    %v1392 = vsel %vm1391, %v1387, %v1360
    %v1393 = vsel %vm1391, %v1388, %v1362
    %v1394 = vsel %vm1391, %v1389, %v1364
    %v1395 = vsel %vm1391, %v1390, %v1366
    %vm1396 = vcmask 785408
    %v1397 = vsel %vm1396, %v1392, %v1376
    %v1398 = vsel %vm1396, %v1393, %v1378
    %v1399 = vsel %vm1396, %v1394, %v1380
    %v1400 = vsel %vm1396, %v1395, %v1382
    %v1401 = vpack.c.bf16 %v1398, %v1397
    %v1402 = vpack.c.bf16 %v1400, %v1399
    %v1403 = vld [vmem:[#allocation7] sm:$0xf]
    %v1404 = vld [vmem:[#allocation7 + $0x4] sm:$0xf]
    %v1405 = vld [vmem:[#allocation7 + $0x8] sm:$0xf]
    %v1406 = vld [vmem:[#allocation7 + $0xc] sm:$0xf]
    %v1407 = vld [vmem:[#allocation7 + $0x10] sm:$0xf]
    %v1408 = vld [vmem:[#allocation7 + $0x14] sm:$0xf]
    %v1409 = vld [vmem:[#allocation7 + $0x18] sm:$0xf]
    %v1410 = vld [vmem:[#allocation7 + $0x1c] sm:$0xf]
    %v1411 = vld [vmem:[#allocation7 + $0x20] sm:$0xf]
    %v1412 = vld [vmem:[#allocation7 + $0x24] sm:$0xf]
    %v1413 = vld [vmem:[#allocation7 + $0x28] sm:$0xf]
    %v1414 = vld [vmem:[#allocation7 + $0x2c] sm:$0xf]
    %v1415 = vld [vmem:[#allocation7 + $0x30] sm:$0xf]
    %v1416 = vld [vmem:[#allocation7 + $0x34] sm:$0xf]
    %v1417 = vld [vmem:[#allocation7 + $0x38] sm:$0xf]
    %v1418 = vld [vmem:[#allocation7 + $0x3c] sm:$0xf]
    %v1419 = vld [vmem:[%s3] sm:$0x1]
    %v1421 = vlaneseq
    %v1422 = vshrl.u32 %v1421, 7
    %v1423 = vsub.s32 0, %v1422
    %v1424 = vrot.slane %v1419, %v1423
    %v1442 = vunpack.c.l.b16 %v1403
    %v1443 = vunpack.c.l.b16 %v1404
    %v1444 = vunpack.c.l.b16 %v1405
    %v1445 = vunpack.c.l.b16 %v1406
    %v1446 = vunpack.c.l.b16 %v1407
    %v1447 = vunpack.c.l.b16 %v1408
    %v1448 = vunpack.c.l.b16 %v1409
    %v1449 = vunpack.c.l.b16 %v1410
    %v1450 = vunpack.c.l.b16 %v1411
    %v1451 = vunpack.c.l.b16 %v1412
    %v1452 = vunpack.c.l.b16 %v1413
    %v1453 = vunpack.c.l.b16 %v1414
    %v1454 = vunpack.c.l.b16 %v1415
    %v1455 = vunpack.c.l.b16 %v1416
    %v1456 = vunpack.c.l.b16 %v1417
    %v1457 = vunpack.c.l.b16 %v1418
    %v1458 = vpack.c.b16 %v1443, %v1442
    %v1459 = vpack.c.b16 %v1445, %v1444
    %v1460 = vpack.c.b16 %v1447, %v1446
    %v1461 = vpack.c.b16 %v1449, %v1448
    %v1462 = vpack.c.b16 %v1451, %v1450
    %v1463 = vpack.c.b16 %v1453, %v1452
    %v1464 = vpack.c.b16 %v1455, %v1454
    %v1465 = vpack.c.b16 %v1457, %v1456
    %1474 = vmatprep.subr.bf16.mxu0 0
    %1475 = vmatpush1.bf16.msra.mxu0 %v1458
    %1476 = vmatprep.subr.bf16.mxu0 0
    %1477 = vmatpush1.bf16.msra.mxu0 %v1459
    %1478 = vmatprep.subr.bf16.mxu0 0
    %1479 = vmatpush1.bf16.msra.mxu0 %v1460
    %1480 = vmatprep.subr.bf16.mxu0 0
    %1481 = vmatpush1.bf16.msra.mxu0 %v1461
    %1482 = vmatprep.subr.bf16.mxu0 0
    %1483 = vmatpush1.bf16.msra.mxu0 %v1462
    %1484 = vmatprep.subr.bf16.mxu0 0
    %1485 = vmatpush1.bf16.msra.mxu0 %v1463
    %1486 = vmatprep.subr.bf16.mxu0 0
    %1487 = vmatpush1.bf16.msra.mxu0 %v1464
    %1488 = vmatprep.subr.bf16.mxu0 0
    %1489 = vmatpush1.bf16.msra.mxu0 %v1465
    %1490 = vmatprep.subr.bf16.mxu0 0
    %1491 = vmatpush1.bf16.msra.mxu0 0
    %1492 = vmatprep.subr.bf16.mxu0 0
    %1493 = vmatpush1.bf16.msra.mxu0 0
    %1494 = vmatprep.subr.bf16.mxu0 0
    %1495 = vmatpush1.bf16.msra.mxu0 0
    %1496 = vmatprep.subr.bf16.mxu0 0
    %1497 = vmatpush1.bf16.msra.mxu0 0
    %1498 = vmatprep.subr.bf16.mxu0 0
    %1499 = vmatpush1.bf16.msra.mxu0 0
    %1500 = vmatprep.subr.bf16.mxu0 0
    %1501 = vmatpush1.bf16.msra.mxu0 0
    %1502 = vmatprep.subr.bf16.mxu0 0
    %1503 = vmatpush1.bf16.msra.mxu0 0
    %1504 = vmatprep.subr.bf16.mxu0 0
    %1505 = vmatpush1.bf16.msra.mxu0 0
    %1506 = vmatprep.mubr.bf16.mxu0 0
    %1507 = vmatmul.mubr.bf16.gmra.mrb[0].mxu0 %v1401
    %v1508 = vpop.f32.mrb[0].mxu0
    %v1509 = vadd.f32 %v1424, %v1508
    %v1510 = vpop.f32.mrb[0].mxu0
    %v1511 = vpop.f32.mrb[0].mxu0
    %v1512 = vadd.f32 %v1424, %v1511
    %v1513 = vpop.f32.mrb[0].mxu0
    %1514 = vmatprep.mubr.bf16.mxu0 0
    %1515 = vmatmul.mubr.bf16.gmra.mrb[0].mxu0 %v1402
    %v1516 = vpop.f32.mrb[0].mxu0
    %v1517 = vadd.f32 %v1424, %v1516
    %v1518 = vpop.f32.mrb[0].mxu0
    %v1519 = vpop.f32.mrb[0].mxu0
    %v1520 = vadd.f32 %v1424, %v1519
    %v1521 = vpop.f32.mrb[0].mxu0
    %1522 = vdwg.mxu0
    %1523 = vst [vmem:[#allocation8] sm:$0xff] %v1509
    %1524 = vst [vmem:[#allocation8 + $0x8] sm:$0xff] %v1512
    %1525 = vst [vmem:[#allocation8 + $0x10] sm:$0xff] %v1517
    %1526 = vst [vmem:[#allocation8 + $0x18] sm:$0xff] %v1520
    // Predicated region
    $region30: #{multiple_heads_forward.1} parent=1 // pred_check
      _
    $region31: #{multiple_heads_forward.1} parent=1 // pred_check_branch
      %1528 = sbr.rel (0) target = $region33
    $region32: #{multiple_heads_forward.1} parent=1 // pred_region
      %s1530 = ssub.s32 512, 512
      %1531 = vsyncadd [#allocation4], %s1530
      %s1532 = sshll.u32 [#allocation8], 4
      %s1533 = int_to_ptr.vmem [resolvable:$true] %s1532
      %1538 = dma.vmem_to_hbm [thread:$0]  %s1533, 512, %s4, [#allocation4], 128, 128, 8
    $region33: #{multiple_heads_forward.1} parent=1 // pred_fallthru
      _
    // Predicated region
    $region34: #{multiple_heads_forward.1} parent=1 // pred_check
      _
    $region35: #{multiple_heads_forward.1} parent=1 // pred_check_branch
      %1540 = sbr.rel (0) target = $region37
    $region36: #{multiple_heads_forward.1} parent=1 // pred_region
      %1541 = dma.done [#allocation4], 512
    $region37: #{multiple_heads_forward.1} parent=1 // pred_fallthru
      _
    %1542 = vsyncpa [#allocation3], 1
    %1543 = vsyncpa [#allocation6], 1
    %1544 = vsyncpa [#allocation4], 1

</llo_original>
